<compile_context>
chip_gen: v6e
topology: v6e:2x2x1
jax: 0.10.0
libtpu: 0.0.40
codegen_flags: <defaults>
</compile_context>

<pallas_src>
import functools

import jax
import jax.numpy as jnp
from jax import lax
from jax.experimental import pallas as pl
from jax.experimental.pallas import tpu as pltpu


def _round_up(x, m):
    return (x + m - 1) // m * m


def _lstm_recurrence_kernel(pre_ref, bias_ref, whh_ref, w1_ref, b1_ref, *rest,
                            hp, t_real, tc, relup, has_out2, need_mask):
    """Recurrent part of the LSTM + classifier head on the last time chunk.

    pre_ref  : (Tc, Bt, 4*Hp) f32   pre-gates = x @ W_ih (hoisted GEMM)
    bias_ref : (1, 4*Hp)      f32   b_ih + b_hh, gate-blocked / padded
    whh_ref  : (Hp, 4*Hp)     bf16  recurrent weights (gate-blocked, padded)
    w1_ref   : (Hp, O1p)      bf16
    b1_ref   : (1, O1p)       f32
    [w2_ref : (O1p, Ofp) bf16, b2_ref : (1, Ofp) f32]  (only if has_out2)
    out_ref  : (Bt, Ofp)      f32
    h_sc/c_sc: (Bt, Hp)       f32   persistent state across time chunks
    """
    if has_out2:
        w2_ref, b2_ref, out_ref, h_sc, c_sc = rest
    else:
        out_ref, h_sc, c_sc = rest

    t_chunk = pl.program_id(1)
    bt = h_sc.shape[0]

    # Zero-init the LSTM state at the start of each batch tile's time sweep
    # (matches the torch.zeros initial state).
    @pl.when(t_chunk == 0)
    def _():
        h_sc[...] = jnp.zeros_like(h_sc)
        c_sc[...] = jnp.zeros_like(c_sc)

    # Hoisted out of the inner loop: weights + broadcast bias (anti-pattern to
    # re-broadcast per iteration).
    whh = whh_ref[...]                                           # (Hp, 4Hp) bf16
    bias = jnp.broadcast_to(bias_ref[...], (bt, 4 * hp))         # (Bt, 4Hp) f32

    def step(s, carry):
        h, c = carry
        pre = pre_ref[s]                                         # (Bt, 4Hp) f32
        gates = pre + bias + jnp.dot(h.astype(jnp.bfloat16), whh,
                                     preferred_element_type=jnp.float32)
        # Gate-blocked, 128-lane aligned slices: pure per-lane VPU/EUP work.
        i_g = jax.nn.sigmoid(gates[:, 0 * hp:1 * hp])
        f_g = jax.nn.sigmoid(gates[:, 1 * hp:2 * hp])
        g_g = jnp.tanh(gates[:, 2 * hp:3 * hp])
        o_g = jax.nn.sigmoid(gates[:, 3 * hp:4 * hp])
        c_new = f_g * c + i_g * g_g
        h_new = o_g * jnp.tanh(c_new)
        if need_mask:  # only emitted when T was padded up to a multiple of Tc
            valid = (t_chunk * tc + s) < t_real
            h_new = jnp.where(valid, h_new, h)
            c_new = jnp.where(valid, c_new, c)
        return h_new, c_new

    unroll = tc if tc <= 8 else 8
    h, c = lax.fori_loop(0, tc, step, (h_sc[...], c_sc[...]), unroll=unroll)
    h_sc[...] = h
    c_sc[...] = c

    # Classifier head on the final time chunk only.
    @pl.when(t_chunk == pl.num_programs(1) - 1)
    def _():
        y = jnp.dot(h.astype(jnp.bfloat16), w1_ref[...],
                    preferred_element_type=jnp.float32) + b1_ref[...]
        if relup:
            y = jnp.maximum(y, 0.0)
        if has_out2:
            y = jnp.dot(y.astype(jnp.bfloat16), w2_ref[...],
                        preferred_element_type=jnp.float32) + b2_ref[...]
        out_ref[...] = y.astype(out_ref.dtype)


def classifier_lstm_forward(x, params, *, relup=True, t_chunk=128, b_tile=None):
    """x: (B, input_size, T) float32, identical to the PyTorch forward input."""
    B, D, T = x.shape
    H = params["w_hh_t"].shape[0]
    O1 = params["w1_t"].shape[1]
    has_out2 = params.get("w2_t") is not None
    O_final = params["w2_t"].shape[1] if has_out2 else O1

    LANE, SUB = 128, 8
    Hp = _round_up(H, LANE)            # lane-aligned hidden size
    O1p = _round_up(O1, LANE)
    Ofp = _round_up(O_final, LANE)     # lane-dense output store
    Bp = _round_up(max(B, SUB), SUB)   # sublane-aligned batch
    if b_tile is None:
        # One batch tile by default; pass a smaller multiple of 8 to split the
        # (independent) batch recurrences across multiple TensorCores.
        b_tile = Bp

    # Clamp the time chunk so the double-buffered pre-gate block stays well
    # inside the scoped-VMEM budget on all chip generations.
    vmem_budget = 12 * 1024 * 1024
    per_step_bytes = b_tile * 4 * Hp * 4          # one timestep of pre, f32
    tc_cap = max(1, vmem_budget // (2 * per_step_bytes))
    Tc = max(1, min(t_chunk, T, tc_cap))
    T_pad = _round_up(T, Tc)

    def pad_gate_cols(w):
        """(..., 4H) -> (..., 4Hp), per-gate zero-padded so gate k starts at k*Hp."""
        parts = []
        for k in range(4):
            g = w[..., k * H:(k + 1) * H]
            pad_width = [(0, 0)] * (w.ndim - 1) + [(0, Hp - H)]
            parts.append(jnp.pad(g, pad_width))
        return jnp.concatenate(parts, axis=-1)

    # --- Padded / gate-blocked parameters ------------------------------------
    w_ih_p = pad_gate_cols(params["w_ih_t"])                           # (D, 4Hp)
    w_hh_p = jnp.pad(pad_gate_cols(params["w_hh_t"]),
                     ((0, Hp - H), (0, 0))).astype(jnp.bfloat16)       # (Hp, 4Hp)
    bias_p = pad_gate_cols((params["b_ih"] + params["b_hh"])[None, :]) # (1, 4Hp)

    w1_p = jnp.pad(params["w1_t"],
                   ((0, Hp - H), (0, O1p - O1))).astype(jnp.bfloat16)  # (Hp, O1p)
    b1_p = jnp.pad(params["b1"], (0, O1p - O1)).reshape(1, O1p)
    if has_out2:
        O2 = params["w2_t"].shape[1]
        w2_p = jnp.pad(params["w2_t"],
                       ((0, O1p - O1), (0, Ofp - O2))).astype(jnp.bfloat16)
        b2_p = jnp.pad(params["b2"], (0, Ofp - O2)).reshape(1, Ofp)

    # --- Hoisted input projection: one big GEMM, bias added in-kernel --------
    x_tbd = jnp.transpose(x, (2, 0, 1))                                # (T, B, D)
    x_tbd = jnp.pad(x_tbd, ((0, T_pad - T), (0, Bp - B), (0, 0)))
    pre = jnp.dot(x_tbd.reshape(T_pad * Bp, D).astype(jnp.bfloat16),
                  w_ih_p.astype(jnp.bfloat16),
                  preferred_element_type=jnp.float32)
    pre = pre.reshape(T_pad, Bp, 4 * Hp)                               # f32

    # --- Pallas recurrence kernel ---------------------------------------------
    n_b = Bp // b_tile
    n_t = T_pad // Tc
    G4H = 4 * Hp

    in_arrays = [pre, bias_p, w_hh_p, w1_p, b1_p]
    in_specs = [
        pl.BlockSpec((Tc, b_tile, G4H), lambda b, t: (t, b, 0)),
        pl.BlockSpec((1, G4H), lambda b, t: (0, 0)),
        pl.BlockSpec((Hp, G4H), lambda b, t: (0, 0)),
        pl.BlockSpec((Hp, O1p), lambda b, t: (0, 0)),
        pl.BlockSpec((1, O1p), lambda b, t: (0, 0)),
    ]
    if has_out2:
        in_arrays += [w2_p, b2_p]
        in_specs += [
            pl.BlockSpec((O1p, Ofp), lambda b, t: (0, 0)),
            pl.BlockSpec((1, Ofp), lambda b, t: (0, 0)),
        ]

    kernel = functools.partial(
        _lstm_recurrence_kernel,
        hp=Hp, t_real=T, tc=Tc, relup=relup, has_out2=has_out2,
        need_mask=(T_pad != T))

    out = pl.pallas_call(
        kernel,
        out_shape=jax.ShapeDtypeStruct((Bp, Ofp), jnp.float32),
        grid_spec=pltpu.PrefetchScalarGridSpec(
            num_scalar_prefetch=0,
            grid=(n_b, n_t),
            in_specs=in_specs,
            out_specs=pl.BlockSpec((b_tile, Ofp), lambda b, t: (b, 0)),
            scratch_shapes=[
                pltpu.VMEM((b_tile, Hp), jnp.float32),   # h state
                pltpu.VMEM((b_tile, Hp), jnp.float32),   # c state
            ],
        ),
        compiler_params=pltpu.CompilerParams(
            # batch tiles are independent (megacore-shardable); time is sequential
            dimension_semantics=("parallel", "arbitrary"),
            vmem_limit_bytes=32 * 1024 * 1024,
        ),
    )(*in_arrays)

    return out[:B, :O_final]


def ref_forward(x, params, *, relup=True):
    """Pure-JAX f32 reference implementing the same PyTorch semantics."""
    B, D, T = x.shape
    H = params["w_hh_t"].shape[0]
    x_btd = jnp.transpose(x, (0, 2, 1))          # (B, T, D)
    b = params["b_ih"] + params["b_hh"]

    def step(carry, x_t):
        h, c = carry
        gates = x_t @ params["w_ih_t"] + h @ params["w_hh_t"] + b
        i = jax.nn.sigmoid(gates[:, 0 * H:1 * H])
        f = jax.nn.sigmoid(gates[:, 1 * H:2 * H])
        g = jnp.tanh(gates[:, 2 * H:3 * H])
        o = jax.nn.sigmoid(gates[:, 3 * H:4 * H])
        c = f * c + i * g
        h = o * jnp.tanh(c)
        return (h, c), None

    h0 = jnp.zeros((B, H), jnp.float32)
    (h, _), _ = jax.lax.scan(step, (h0, h0), jnp.transpose(x_btd, (1, 0, 2)))
    y = h @ params["w1_t"] + params["b1"]
    if relup:
        y = jnp.maximum(y, 0.0)
    if params.get("w2_t") is not None:
        y = y @ params["w2_t"] + params["b2"]
    return y


def init_params(key, input_size, lstm_size, output1_size, output2_size):
    ks = jax.random.split(key, 10)
    s = 1.0 / jnp.sqrt(lstm_size)

    def u(k, shape, scale):
        return jax.random.uniform(k, shape, jnp.float32, -scale, scale)

    params = {
        # stored pre-transposed: (in, out); gate order [i, f, g, o] like PyTorch
        "w_ih_t": u(ks[0], (input_size, 4 * lstm_size), s),
        "w_hh_t": u(ks[1], (lstm_size, 4 * lstm_size), s),
        "b_ih": u(ks[2], (4 * lstm_size,), s),
        "b_hh": u(ks[3], (4 * lstm_size,), s),
        "w1_t": u(ks[4], (lstm_size, output1_size), s),
        "b1": u(ks[5], (output1_size,), s),
    }
    if output2_size is None:
        params["w2_t"] = None
        params["b2"] = None
    else:
        # NOTE: PyTorch module declares output2 = Linear(lstm_size, output2_size);
        # its forward only type-checks when output1_size == lstm_size, which the
        # example below enforces to reproduce the semantics exactly.
        params["w2_t"] = u(ks[6], (output1_size, output2_size), s)
        params["b2"] = u(ks[7], (output2_size,), s)
    return params


if __name__ == "__main__":
    # Small shapes: batch=4, input_size=16, seq=8, lstm_size=32,
    # output1_size=32 (== lstm_size, required by the original module), output2_size=8
    B, D, T = 4, 16, 8
    H, O1, O2 = 32, 32, 8
    relup = True

    key = jax.random.PRNGKey(0)
    kx, kp = jax.random.split(key)
    x = jax.random.normal(kx, (B, D, T), jnp.float32)   # PyTorch forward input layout
    params = init_params(kp, D, H, O1, O2)

    out = classifier_lstm_forward(x, params, relup=relup)
    out = jax.block_until_ready(out)

    ref = ref_forward(x, params, relup=relup)
    assert out.shape == (B, O2), out.shape
    # bf16 MXU inputs with f32 accumulation vs. pure-f32 reference.
    assert jnp.allclose(out, ref, atol=3e-2, rtol=3e-2), (
        f"max err {jnp.max(jnp.abs(out - ref))}")

    print("KERNEL_OK")
</pallas_src>

<mosaic_0001>
module attributes {stable_mosaic.version = 11 : i64} {
  func.func @_lstm_recurrence_kernel(%arg0: i32, %arg1: i32, %arg2: memref<8x8x512xf32, #tpu.memory_space<vmem>>, %arg3: memref<1x512xf32, #tpu.memory_space<vmem>>, %arg4: memref<128x512xbf16, #tpu.memory_space<vmem>>, %arg5: memref<128x128xbf16, #tpu.memory_space<vmem>>, %arg6: memref<1x128xf32, #tpu.memory_space<vmem>>, %arg7: memref<128x128xbf16, #tpu.memory_space<vmem>>, %arg8: memref<1x128xf32, #tpu.memory_space<vmem>>, %arg9: memref<8x128xf32, #tpu.memory_space<vmem>>, %arg10: memref<8x128xf32, #tpu.memory_space<vmem>>, %arg11: memref<8x128xf32, #tpu.memory_space<vmem>>) attributes {dimension_semantics = [#tpu.dimension_semantics<parallel>, #tpu.dimension_semantics<arbitrary>], iteration_bounds = array<i64: 1, 1>, scalar_prefetch = 0 : i64, scratch_operands = 2 : i64, tpu.core_type = #tpu.core_type<tc>, window_params = [{transform_indices = @transform_0, window_bounds = array<i64: 8, 8, 512>}, {pipeline_mode = #tpu.pipeline_mode<synchronous>, transform_indices = @transform_1, window_bounds = array<i64: 1, 512>}, {pipeline_mode = #tpu.pipeline_mode<synchronous>, transform_indices = @transform_2, window_bounds = array<i64: 128, 512>}, {pipeline_mode = #tpu.pipeline_mode<synchronous>, transform_indices = @transform_3, window_bounds = array<i64: 128, 128>}, {pipeline_mode = #tpu.pipeline_mode<synchronous>, transform_indices = @transform_4, window_bounds = array<i64: 1, 128>}, {pipeline_mode = #tpu.pipeline_mode<synchronous>, transform_indices = @transform_5, window_bounds = array<i64: 128, 128>}, {pipeline_mode = #tpu.pipeline_mode<synchronous>, transform_indices = @transform_6, window_bounds = array<i64: 1, 128>}, {transform_indices = @transform_7, window_bounds = array<i64: 8, 128>}]} {
    %c0_i32 = arith.constant 0 : i32
    %0 = arith.cmpi eq, %arg1, %c0_i32 : i32
    %1 = arith.extui %0 : i1 to i32
    %c0_i32_0 = arith.constant 0 : i32
    %2 = arith.cmpi ne, %1, %c0_i32_0 : i32
    scf.if %2 {
      %cst_62 = arith.constant 0.000000e+00 : f32
      %270 = vector.broadcast %cst_62 : f32 to vector<8x128xf32>
      %c0_63 = arith.constant 0 : index
      %c0_64 = arith.constant 0 : index
      %271 = vector.load %arg10[%c0_63, %c0_64] : memref<8x128xf32, #tpu.memory_space<vmem>>, vector<8x128xf32>
      tpu.vector_store %arg10[%c0_63, %c0_64], %270 {strides = array<i32>} : memref<8x128xf32, #tpu.memory_space<vmem>>, vector<8x128xf32>,
      %cst_65 = arith.constant 0.000000e+00 : f32
      %272 = vector.broadcast %cst_65 : f32 to vector<8x128xf32>
      %c0_66 = arith.constant 0 : index
      %c0_67 = arith.constant 0 : index
      %273 = vector.load %arg11[%c0_66, %c0_67] : memref<8x128xf32, #tpu.memory_space<vmem>>, vector<8x128xf32>
      tpu.vector_store %arg11[%c0_66, %c0_67], %272 {strides = array<i32>} : memref<8x128xf32, #tpu.memory_space<vmem>>, vector<8x128xf32>,
    } else {
    }
    %c0 = arith.constant 0 : index
    %c0_1 = arith.constant 0 : index
    %3 = vector.load %arg4[%c0, %c0_1] : memref<128x512xbf16, #tpu.memory_space<vmem>>, vector<128x512xbf16>
    %c0_2 = arith.constant 0 : index
    %c0_3 = arith.constant 0 : index
    %4 = vector.load %arg3[%c0_2, %c0_3] : memref<1x512xf32, #tpu.memory_space<vmem>>, vector<1x512xf32>
    %5 = vector.shape_cast %4 : vector<1x512xf32> to vector<1x512xf32>
    %6 = vector.broadcast %5 : vector<1x512xf32> to vector<8x512xf32>
    %c0_4 = arith.constant 0 : index
    %c0_5 = arith.constant 0 : index
    %7 = vector.load %arg10[%c0_4, %c0_5] : memref<8x128xf32, #tpu.memory_space<vmem>>, vector<8x128xf32>
    %c0_6 = arith.constant 0 : index
    %c0_7 = arith.constant 0 : index
    %8 = vector.load %arg11[%c0_6, %c0_7] : memref<8x128xf32, #tpu.memory_space<vmem>>, vector<8x128xf32>
    %c0_i32_8 = arith.constant 0 : i32
    %9 = arith.index_cast %c0_i32_8 : i32 to index
    %c0_9 = arith.constant 0 : index
    %c0_10 = arith.constant 0 : index
    %10 = vector.load %arg2[%9, %c0_9, %c0_10] : memref<8x8x512xf32, #tpu.memory_space<vmem>>, vector<1x8x512xf32>
    %11 = vector.shape_cast %10 : vector<1x8x512xf32> to vector<8x512xf32>
    %12 = arith.addf %11, %6 : vector<8x512xf32>
    %13 = arith.truncf %7 : vector<8x128xf32> to vector<8x128xbf16>
    %cst = arith.constant dense<0.000000e+00> : vector<8x512xf32>
    %14 = tpu.matmul %13, %3, %cst {dimension_numbers = #tpu.dot_dimension_numbers<[1], [0], [0], [1], [0, 0, 1, 1], [], []>} : vector<8x128xbf16>, vector<128x512xbf16>, vector<8x512xf32> -> vector<8x512xf32>
    %15 = arith.addf %12, %14 : vector<8x512xf32>
    %16 = vector.extract_strided_slice %15 {offsets = [0, 0], sizes = [8, 128], strides = [1, 1]} : vector<8x512xf32> to vector<8x128xf32>
    %17 = arith.negf %16 : vector<8x128xf32>
    %18 = math.exp %17 : vector<8x128xf32>
    %cst_11 = arith.constant 1.000000e+00 : f32
    %19 = vector.broadcast %cst_11 : f32 to vector<8x128xf32>
    %20 = arith.addf %19, %18 : vector<8x128xf32>
    %21 = arith.divf %19, %20 : vector<8x128xf32>
    %22 = vector.extract_strided_slice %15 {offsets = [0, 128], sizes = [8, 128], strides = [1, 1]} : vector<8x512xf32> to vector<8x128xf32>
    %23 = arith.negf %22 : vector<8x128xf32>
    %24 = math.exp %23 : vector<8x128xf32>
    %cst_12 = arith.constant 1.000000e+00 : f32
    %25 = vector.broadcast %cst_12 : f32 to vector<8x128xf32>
    %26 = arith.addf %25, %24 : vector<8x128xf32>
    %27 = arith.divf %25, %26 : vector<8x128xf32>
    %28 = vector.extract_strided_slice %15 {offsets = [0, 256], sizes = [8, 128], strides = [1, 1]} : vector<8x512xf32> to vector<8x128xf32>
    %29 = math.tanh %28 : vector<8x128xf32>
    %30 = vector.extract_strided_slice %15 {offsets = [0, 384], sizes = [8, 128], strides = [1, 1]} : vector<8x512xf32> to vector<8x128xf32>
    %31 = arith.negf %30 : vector<8x128xf32>
    %32 = math.exp %31 : vector<8x128xf32>
    %cst_13 = arith.constant 1.000000e+00 : f32
    %33 = vector.broadcast %cst_13 : f32 to vector<8x128xf32>
    %34 = arith.addf %33, %32 : vector<8x128xf32>
    %35 = arith.divf %33, %34 : vector<8x128xf32>
    %36 = arith.mulf %27, %8 : vector<8x128xf32>
    %37 = arith.mulf %21, %29 : vector<8x128xf32>
    %38 = arith.addf %36, %37 : vector<8x128xf32>
    %39 = math.tanh %38 : vector<8x128xf32>
    %40 = arith.mulf %35, %39 : vector<8x128xf32>
    %c1_i32 = arith.constant 1 : i32
    %41 = arith.index_cast %c1_i32 : i32 to index
    %c0_14 = arith.constant 0 : index
    %c0_15 = arith.constant 0 : index
    %42 = vector.load %arg2[%41, %c0_14, %c0_15] : memref<8x8x512xf32, #tpu.memory_space<vmem>>, vector<1x8x512xf32>
    %43 = vector.shape_cast %42 : vector<1x8x512xf32> to vector<8x512xf32>
    %44 = arith.addf %43, %6 : vector<8x512xf32>
    %45 = arith.truncf %40 : vector<8x128xf32> to vector<8x128xbf16>
    %cst_16 = arith.constant dense<0.000000e+00> : vector<8x512xf32>
    %46 = tpu.matmul %45, %3, %cst_16 {dimension_numbers = #tpu.dot_dimension_numbers<[1], [0], [0], [1], [0, 0, 1, 1], [], []>} : vector<8x128xbf16>, vector<128x512xbf16>, vector<8x512xf32> -> vector<8x512xf32>
    %47 = arith.addf %44, %46 : vector<8x512xf32>
    %48 = vector.extract_strided_slice %47 {offsets = [0, 0], sizes = [8, 128], strides = [1, 1]} : vector<8x512xf32> to vector<8x128xf32>
    %49 = arith.negf %48 : vector<8x128xf32>
    %50 = math.exp %49 : vector<8x128xf32>
    %cst_17 = arith.constant 1.000000e+00 : f32
    %51 = vector.broadcast %cst_17 : f32 to vector<8x128xf32>
    %52 = arith.addf %51, %50 : vector<8x128xf32>
    %53 = arith.divf %51, %52 : vector<8x128xf32>
    %54 = vector.extract_strided_slice %47 {offsets = [0, 128], sizes = [8, 128], strides = [1, 1]} : vector<8x512xf32> to vector<8x128xf32>
    %55 = arith.negf %54 : vector<8x128xf32>
    %56 = math.exp %55 : vector<8x128xf32>
    %cst_18 = arith.constant 1.000000e+00 : f32
    %57 = vector.broadcast %cst_18 : f32 to vector<8x128xf32>
    %58 = arith.addf %57, %56 : vector<8x128xf32>
    %59 = arith.divf %57, %58 : vector<8x128xf32>
    %60 = vector.extract_strided_slice %47 {offsets = [0, 256], sizes = [8, 128], strides = [1, 1]} : vector<8x512xf32> to vector<8x128xf32>
    %61 = math.tanh %60 : vector<8x128xf32>
    %62 = vector.extract_strided_slice %47 {offsets = [0, 384], sizes = [8, 128], strides = [1, 1]} : vector<8x512xf32> to vector<8x128xf32>
    %63 = arith.negf %62 : vector<8x128xf32>
    %64 = math.exp %63 : vector<8x128xf32>
    %cst_19 = arith.constant 1.000000e+00 : f32
    %65 = vector.broadcast %cst_19 : f32 to vector<8x128xf32>
    %66 = arith.addf %65, %64 : vector<8x128xf32>
    %67 = arith.divf %65, %66 : vector<8x128xf32>
    %68 = arith.mulf %59, %38 : vector<8x128xf32>
    %69 = arith.mulf %53, %61 : vector<8x128xf32>
    %70 = arith.addf %68, %69 : vector<8x128xf32>
    %71 = math.tanh %70 : vector<8x128xf32>
    %72 = arith.mulf %67, %71 : vector<8x128xf32>
    %c2_i32 = arith.constant 2 : i32
    %73 = arith.index_cast %c2_i32 : i32 to index
    %c0_20 = arith.constant 0 : index
    %c0_21 = arith.constant 0 : index
    %74 = vector.load %arg2[%73, %c0_20, %c0_21] : memref<8x8x512xf32, #tpu.memory_space<vmem>>, vector<1x8x512xf32>
    %75 = vector.shape_cast %74 : vector<1x8x512xf32> to vector<8x512xf32>
    %76 = arith.addf %75, %6 : vector<8x512xf32>
    %77 = arith.truncf %72 : vector<8x128xf32> to vector<8x128xbf16>
    %cst_22 = arith.constant dense<0.000000e+00> : vector<8x512xf32>
    %78 = tpu.matmul %77, %3, %cst_22 {dimension_numbers = #tpu.dot_dimension_numbers<[1], [0], [0], [1], [0, 0, 1, 1], [], []>} : vector<8x128xbf16>, vector<128x512xbf16>, vector<8x512xf32> -> vector<8x512xf32>
    %79 = arith.addf %76, %78 : vector<8x512xf32>
    %80 = vector.extract_strided_slice %79 {offsets = [0, 0], sizes = [8, 128], strides = [1, 1]} : vector<8x512xf32> to vector<8x128xf32>
    %81 = arith.negf %80 : vector<8x128xf32>
    %82 = math.exp %81 : vector<8x128xf32>
    %cst_23 = arith.constant 1.000000e+00 : f32
    %83 = vector.broadcast %cst_23 : f32 to vector<8x128xf32>
    %84 = arith.addf %83, %82 : vector<8x128xf32>
    %85 = arith.divf %83, %84 : vector<8x128xf32>
    %86 = vector.extract_strided_slice %79 {offsets = [0, 128], sizes = [8, 128], strides = [1, 1]} : vector<8x512xf32> to vector<8x128xf32>
    %87 = arith.negf %86 : vector<8x128xf32>
    %88 = math.exp %87 : vector<8x128xf32>
    %cst_24 = arith.constant 1.000000e+00 : f32
    %89 = vector.broadcast %cst_24 : f32 to vector<8x128xf32>
    %90 = arith.addf %89, %88 : vector<8x128xf32>
    %91 = arith.divf %89, %90 : vector<8x128xf32>
    %92 = vector.extract_strided_slice %79 {offsets = [0, 256], sizes = [8, 128], strides = [1, 1]} : vector<8x512xf32> to vector<8x128xf32>
    %93 = math.tanh %92 : vector<8x128xf32>
    %94 = vector.extract_strided_slice %79 {offsets = [0, 384], sizes = [8, 128], strides = [1, 1]} : vector<8x512xf32> to vector<8x128xf32>
    %95 = arith.negf %94 : vector<8x128xf32>
    %96 = math.exp %95 : vector<8x128xf32>
    %cst_25 = arith.constant 1.000000e+00 : f32
    %97 = vector.broadcast %cst_25 : f32 to vector<8x128xf32>
    %98 = arith.addf %97, %96 : vector<8x128xf32>
    %99 = arith.divf %97, %98 : vector<8x128xf32>
    %100 = arith.mulf %91, %70 : vector<8x128xf32>
    %101 = arith.mulf %85, %93 : vector<8x128xf32>
    %102 = arith.addf %100, %101 : vector<8x128xf32>
    %103 = math.tanh %102 : vector<8x128xf32>
    %104 = arith.mulf %99, %103 : vector<8x128xf32>
    %c3_i32 = arith.constant 3 : i32
    %105 = arith.index_cast %c3_i32 : i32 to index
    %c0_26 = arith.constant 0 : index
    %c0_27 = arith.constant 0 : index
    %106 = vector.load %arg2[%105, %c0_26, %c0_27] : memref<8x8x512xf32, #tpu.memory_space<vmem>>, vector<1x8x512xf32>
    %107 = vector.shape_cast %106 : vector<1x8x512xf32> to vector<8x512xf32>
    %108 = arith.addf %107, %6 : vector<8x512xf32>
    %109 = arith.truncf %104 : vector<8x128xf32> to vector<8x128xbf16>
    %cst_28 = arith.constant dense<0.000000e+00> : vector<8x512xf32>
    %110 = tpu.matmul %109, %3, %cst_28 {dimension_numbers = #tpu.dot_dimension_numbers<[1], [0], [0], [1], [0, 0, 1, 1], [], []>} : vector<8x128xbf16>, vector<128x512xbf16>, vector<8x512xf32> -> vector<8x512xf32>
    %111 = arith.addf %108, %110 : vector<8x512xf32>
    %112 = vector.extract_strided_slice %111 {offsets = [0, 0], sizes = [8, 128], strides = [1, 1]} : vector<8x512xf32> to vector<8x128xf32>
    %113 = arith.negf %112 : vector<8x128xf32>
    %114 = math.exp %113 : vector<8x128xf32>
    %cst_29 = arith.constant 1.000000e+00 : f32
    %115 = vector.broadcast %cst_29 : f32 to vector<8x128xf32>
    %116 = arith.addf %115, %114 : vector<8x128xf32>
    %117 = arith.divf %115, %116 : vector<8x128xf32>
    %118 = vector.extract_strided_slice %111 {offsets = [0, 128], sizes = [8, 128], strides = [1, 1]} : vector<8x512xf32> to vector<8x128xf32>
    %119 = arith.negf %118 : vector<8x128xf32>
    %120 = math.exp %119 : vector<8x128xf32>
    %cst_30 = arith.constant 1.000000e+00 : f32
    %121 = vector.broadcast %cst_30 : f32 to vector<8x128xf32>
    %122 = arith.addf %121, %120 : vector<8x128xf32>
    %123 = arith.divf %121, %122 : vector<8x128xf32>
    %124 = vector.extract_strided_slice %111 {offsets = [0, 256], sizes = [8, 128], strides = [1, 1]} : vector<8x512xf32> to vector<8x128xf32>
    %125 = math.tanh %124 : vector<8x128xf32>
    %126 = vector.extract_strided_slice %111 {offsets = [0, 384], sizes = [8, 128], strides = [1, 1]} : vector<8x512xf32> to vector<8x128xf32>
    %127 = arith.negf %126 : vector<8x128xf32>
    %128 = math.exp %127 : vector<8x128xf32>
    %cst_31 = arith.constant 1.000000e+00 : f32
    %129 = vector.broadcast %cst_31 : f32 to vector<8x128xf32>
    %130 = arith.addf %129, %128 : vector<8x128xf32>
    %131 = arith.divf %129, %130 : vector<8x128xf32>
    %132 = arith.mulf %123, %102 : vector<8x128xf32>
    %133 = arith.mulf %117, %125 : vector<8x128xf32>
    %134 = arith.addf %132, %133 : vector<8x128xf32>
    %135 = math.tanh %134 : vector<8x128xf32>
    %136 = arith.mulf %131, %135 : vector<8x128xf32>
    %c4_i32 = arith.constant 4 : i32
    %137 = arith.index_cast %c4_i32 : i32 to index
    %c0_32 = arith.constant 0 : index
    %c0_33 = arith.constant 0 : index
    %138 = vector.load %arg2[%137, %c0_32, %c0_33] : memref<8x8x512xf32, #tpu.memory_space<vmem>>, vector<1x8x512xf32>
    %139 = vector.shape_cast %138 : vector<1x8x512xf32> to vector<8x512xf32>
    %140 = arith.addf %139, %6 : vector<8x512xf32>
    %141 = arith.truncf %136 : vector<8x128xf32> to vector<8x128xbf16>
    %cst_34 = arith.constant dense<0.000000e+00> : vector<8x512xf32>
    %142 = tpu.matmul %141, %3, %cst_34 {dimension_numbers = #tpu.dot_dimension_numbers<[1], [0], [0], [1], [0, 0, 1, 1], [], []>} : vector<8x128xbf16>, vector<128x512xbf16>, vector<8x512xf32> -> vector<8x512xf32>
    %143 = arith.addf %140, %142 : vector<8x512xf32>
    %144 = vector.extract_strided_slice %143 {offsets = [0, 0], sizes = [8, 128], strides = [1, 1]} : vector<8x512xf32> to vector<8x128xf32>
    %145 = arith.negf %144 : vector<8x128xf32>
    %146 = math.exp %145 : vector<8x128xf32>
    %cst_35 = arith.constant 1.000000e+00 : f32
    %147 = vector.broadcast %cst_35 : f32 to vector<8x128xf32>
    %148 = arith.addf %147, %146 : vector<8x128xf32>
    %149 = arith.divf %147, %148 : vector<8x128xf32>
    %150 = vector.extract_strided_slice %143 {offsets = [0, 128], sizes = [8, 128], strides = [1, 1]} : vector<8x512xf32> to vector<8x128xf32>
    %151 = arith.negf %150 : vector<8x128xf32>
    %152 = math.exp %151 : vector<8x128xf32>
    %cst_36 = arith.constant 1.000000e+00 : f32
    %153 = vector.broadcast %cst_36 : f32 to vector<8x128xf32>
    %154 = arith.addf %153, %152 : vector<8x128xf32>
    %155 = arith.divf %153, %154 : vector<8x128xf32>
    %156 = vector.extract_strided_slice %143 {offsets = [0, 256], sizes = [8, 128], strides = [1, 1]} : vector<8x512xf32> to vector<8x128xf32>
    %157 = math.tanh %156 : vector<8x128xf32>
    %158 = vector.extract_strided_slice %143 {offsets = [0, 384], sizes = [8, 128], strides = [1, 1]} : vector<8x512xf32> to vector<8x128xf32>
    %159 = arith.negf %158 : vector<8x128xf32>
    %160 = math.exp %159 : vector<8x128xf32>
    %cst_37 = arith.constant 1.000000e+00 : f32
    %161 = vector.broadcast %cst_37 : f32 to vector<8x128xf32>
    %162 = arith.addf %161, %160 : vector<8x128xf32>
    %163 = arith.divf %161, %162 : vector<8x128xf32>
    %164 = arith.mulf %155, %134 : vector<8x128xf32>
    %165 = arith.mulf %149, %157 : vector<8x128xf32>
    %166 = arith.addf %164, %165 : vector<8x128xf32>
    %167 = math.tanh %166 : vector<8x128xf32>
    %168 = arith.mulf %163, %167 : vector<8x128xf32>
    %c5_i32 = arith.constant 5 : i32
    %169 = arith.index_cast %c5_i32 : i32 to index
    %c0_38 = arith.constant 0 : index
    %c0_39 = arith.constant 0 : index
    %170 = vector.load %arg2[%169, %c0_38, %c0_39] : memref<8x8x512xf32, #tpu.memory_space<vmem>>, vector<1x8x512xf32>
    %171 = vector.shape_cast %170 : vector<1x8x512xf32> to vector<8x512xf32>
    %172 = arith.addf %171, %6 : vector<8x512xf32>
    %173 = arith.truncf %168 : vector<8x128xf32> to vector<8x128xbf16>
    %cst_40 = arith.constant dense<0.000000e+00> : vector<8x512xf32>
    %174 = tpu.matmul %173, %3, %cst_40 {dimension_numbers = #tpu.dot_dimension_numbers<[1], [0], [0], [1], [0, 0, 1, 1], [], []>} : vector<8x128xbf16>, vector<128x512xbf16>, vector<8x512xf32> -> vector<8x512xf32>
    %175 = arith.addf %172, %174 : vector<8x512xf32>
    %176 = vector.extract_strided_slice %175 {offsets = [0, 0], sizes = [8, 128], strides = [1, 1]} : vector<8x512xf32> to vector<8x128xf32>
    %177 = arith.negf %176 : vector<8x128xf32>
    %178 = math.exp %177 : vector<8x128xf32>
    %cst_41 = arith.constant 1.000000e+00 : f32
    %179 = vector.broadcast %cst_41 : f32 to vector<8x128xf32>
    %180 = arith.addf %179, %178 : vector<8x128xf32>
    %181 = arith.divf %179, %180 : vector<8x128xf32>
    %182 = vector.extract_strided_slice %175 {offsets = [0, 128], sizes = [8, 128], strides = [1, 1]} : vector<8x512xf32> to vector<8x128xf32>
    %183 = arith.negf %182 : vector<8x128xf32>
    %184 = math.exp %183 : vector<8x128xf32>
    %cst_42 = arith.constant 1.000000e+00 : f32
    %185 = vector.broadcast %cst_42 : f32 to vector<8x128xf32>
    %186 = arith.addf %185, %184 : vector<8x128xf32>
    %187 = arith.divf %185, %186 : vector<8x128xf32>
    %188 = vector.extract_strided_slice %175 {offsets = [0, 256], sizes = [8, 128], strides = [1, 1]} : vector<8x512xf32> to vector<8x128xf32>
    %189 = math.tanh %188 : vector<8x128xf32>
    %190 = vector.extract_strided_slice %175 {offsets = [0, 384], sizes = [8, 128], strides = [1, 1]} : vector<8x512xf32> to vector<8x128xf32>
    %191 = arith.negf %190 : vector<8x128xf32>
    %192 = math.exp %191 : vector<8x128xf32>
    %cst_43 = arith.constant 1.000000e+00 : f32
    %193 = vector.broadcast %cst_43 : f32 to vector<8x128xf32>
    %194 = arith.addf %193, %192 : vector<8x128xf32>
    %195 = arith.divf %193, %194 : vector<8x128xf32>
    %196 = arith.mulf %187, %166 : vector<8x128xf32>
    %197 = arith.mulf %181, %189 : vector<8x128xf32>
    %198 = arith.addf %196, %197 : vector<8x128xf32>
    %199 = math.tanh %198 : vector<8x128xf32>
    %200 = arith.mulf %195, %199 : vector<8x128xf32>
    %c6_i32 = arith.constant 6 : i32
    %201 = arith.index_cast %c6_i32 : i32 to index
    %c0_44 = arith.constant 0 : index
    %c0_45 = arith.constant 0 : index
    %202 = vector.load %arg2[%201, %c0_44, %c0_45] : memref<8x8x512xf32, #tpu.memory_space<vmem>>, vector<1x8x512xf32>
    %203 = vector.shape_cast %202 : vector<1x8x512xf32> to vector<8x512xf32>
    %204 = arith.addf %203, %6 : vector<8x512xf32>
    %205 = arith.truncf %200 : vector<8x128xf32> to vector<8x128xbf16>
    %cst_46 = arith.constant dense<0.000000e+00> : vector<8x512xf32>
    %206 = tpu.matmul %205, %3, %cst_46 {dimension_numbers = #tpu.dot_dimension_numbers<[1], [0], [0], [1], [0, 0, 1, 1], [], []>} : vector<8x128xbf16>, vector<128x512xbf16>, vector<8x512xf32> -> vector<8x512xf32>
    %207 = arith.addf %204, %206 : vector<8x512xf32>
    %208 = vector.extract_strided_slice %207 {offsets = [0, 0], sizes = [8, 128], strides = [1, 1]} : vector<8x512xf32> to vector<8x128xf32>
    %209 = arith.negf %208 : vector<8x128xf32>
    %210 = math.exp %209 : vector<8x128xf32>
    %cst_47 = arith.constant 1.000000e+00 : f32
    %211 = vector.broadcast %cst_47 : f32 to vector<8x128xf32>
    %212 = arith.addf %211, %210 : vector<8x128xf32>
    %213 = arith.divf %211, %212 : vector<8x128xf32>
    %214 = vector.extract_strided_slice %207 {offsets = [0, 128], sizes = [8, 128], strides = [1, 1]} : vector<8x512xf32> to vector<8x128xf32>
    %215 = arith.negf %214 : vector<8x128xf32>
    %216 = math.exp %215 : vector<8x128xf32>
    %cst_48 = arith.constant 1.000000e+00 : f32
    %217 = vector.broadcast %cst_48 : f32 to vector<8x128xf32>
    %218 = arith.addf %217, %216 : vector<8x128xf32>
    %219 = arith.divf %217, %218 : vector<8x128xf32>
    %220 = vector.extract_strided_slice %207 {offsets = [0, 256], sizes = [8, 128], strides = [1, 1]} : vector<8x512xf32> to vector<8x128xf32>
    %221 = math.tanh %220 : vector<8x128xf32>
    %222 = vector.extract_strided_slice %207 {offsets = [0, 384], sizes = [8, 128], strides = [1, 1]} : vector<8x512xf32> to vector<8x128xf32>
    %223 = arith.negf %222 : vector<8x128xf32>
    %224 = math.exp %223 : vector<8x128xf32>
    %cst_49 = arith.constant 1.000000e+00 : f32
    %225 = vector.broadcast %cst_49 : f32 to vector<8x128xf32>
    %226 = arith.addf %225, %224 : vector<8x128xf32>
    %227 = arith.divf %225, %226 : vector<8x128xf32>
    %228 = arith.mulf %219, %198 : vector<8x128xf32>
    %229 = arith.mulf %213, %221 : vector<8x128xf32>
    %230 = arith.addf %228, %229 : vector<8x128xf32>
    %231 = math.tanh %230 : vector<8x128xf32>
    %232 = arith.mulf %227, %231 : vector<8x128xf32>
    %c7_i32 = arith.constant 7 : i32
    %233 = arith.index_cast %c7_i32 : i32 to index
    %c0_50 = arith.constant 0 : index
    %c0_51 = arith.constant 0 : index
    %234 = vector.load %arg2[%233, %c0_50, %c0_51] : memref<8x8x512xf32, #tpu.memory_space<vmem>>, vector<1x8x512xf32>
    %235 = vector.shape_cast %234 : vector<1x8x512xf32> to vector<8x512xf32>
    %236 = arith.addf %235, %6 : vector<8x512xf32>
    %237 = arith.truncf %232 : vector<8x128xf32> to vector<8x128xbf16>
    %cst_52 = arith.constant dense<0.000000e+00> : vector<8x512xf32>
    %238 = tpu.matmul %237, %3, %cst_52 {dimension_numbers = #tpu.dot_dimension_numbers<[1], [0], [0], [1], [0, 0, 1, 1], [], []>} : vector<8x128xbf16>, vector<128x512xbf16>, vector<8x512xf32> -> vector<8x512xf32>
    %239 = arith.addf %236, %238 : vector<8x512xf32>
    %240 = vector.extract_strided_slice %239 {offsets = [0, 0], sizes = [8, 128], strides = [1, 1]} : vector<8x512xf32> to vector<8x128xf32>
    %241 = arith.negf %240 : vector<8x128xf32>
    %242 = math.exp %241 : vector<8x128xf32>
    %cst_53 = arith.constant 1.000000e+00 : f32
    %243 = vector.broadcast %cst_53 : f32 to vector<8x128xf32>
    %244 = arith.addf %243, %242 : vector<8x128xf32>
    %245 = arith.divf %243, %244 : vector<8x128xf32>
    %246 = vector.extract_strided_slice %239 {offsets = [0, 128], sizes = [8, 128], strides = [1, 1]} : vector<8x512xf32> to vector<8x128xf32>
    %247 = arith.negf %246 : vector<8x128xf32>
    %248 = math.exp %247 : vector<8x128xf32>
    %cst_54 = arith.constant 1.000000e+00 : f32
    %249 = vector.broadcast %cst_54 : f32 to vector<8x128xf32>
    %250 = arith.addf %249, %248 : vector<8x128xf32>
    %251 = arith.divf %249, %250 : vector<8x128xf32>
    %252 = vector.extract_strided_slice %239 {offsets = [0, 256], sizes = [8, 128], strides = [1, 1]} : vector<8x512xf32> to vector<8x128xf32>
    %253 = math.tanh %252 : vector<8x128xf32>
    %254 = vector.extract_strided_slice %239 {offsets = [0, 384], sizes = [8, 128], strides = [1, 1]} : vector<8x512xf32> to vector<8x128xf32>
    %255 = arith.negf %254 : vector<8x128xf32>
    %256 = math.exp %255 : vector<8x128xf32>
    %cst_55 = arith.constant 1.000000e+00 : f32
    %257 = vector.broadcast %cst_55 : f32 to vector<8x128xf32>
    %258 = arith.addf %257, %256 : vector<8x128xf32>
    %259 = arith.divf %257, %258 : vector<8x128xf32>
    %260 = arith.mulf %251, %230 : vector<8x128xf32>
    %261 = arith.mulf %245, %253 : vector<8x128xf32>
    %262 = arith.addf %260, %261 : vector<8x128xf32>
    %263 = math.tanh %262 : vector<8x128xf32>
    %264 = arith.mulf %259, %263 : vector<8x128xf32>
    %c8_i32 = arith.constant 8 : i32
    %c0_56 = arith.constant 0 : index
    %c0_57 = arith.constant 0 : index
    %265 = vector.load %arg10[%c0_56, %c0_57] : memref<8x128xf32, #tpu.memory_space<vmem>>, vector<8x128xf32>
    tpu.vector_store %arg10[%c0_56, %c0_57], %264 {strides = array<i32>} : memref<8x128xf32, #tpu.memory_space<vmem>>, vector<8x128xf32>,
    %c0_58 = arith.constant 0 : index
    %c0_59 = arith.constant 0 : index
    %266 = vector.load %arg11[%c0_58, %c0_59] : memref<8x128xf32, #tpu.memory_space<vmem>>, vector<8x128xf32>
    tpu.vector_store %arg11[%c0_58, %c0_59], %262 {strides = array<i32>} : memref<8x128xf32, #tpu.memory_space<vmem>>, vector<8x128xf32>,
    %c0_i32_60 = arith.constant 0 : i32
    %267 = arith.cmpi eq, %arg1, %c0_i32_60 : i32
    %268 = arith.extui %267 : i1 to i32
    %c0_i32_61 = arith.constant 0 : i32
    %269 = arith.cmpi ne, %268, %c0_i32_61 : i32
    scf.if %269 {
      %270 = arith.truncf %264 : vector<8x128xf32> to vector<8x128xbf16>
      %c0_62 = arith.constant 0 : index
      %c0_63 = arith.constant 0 : index
      %271 = vector.load %arg5[%c0_62, %c0_63] : memref<128x128xbf16, #tpu.memory_space<vmem>>, vector<128x128xbf16>
      %cst_64 = arith.constant dense<0.000000e+00> : vector<8x128xf32>
      %272 = tpu.matmul %270, %271, %cst_64 {dimension_numbers = #tpu.dot_dimension_numbers<[1], [0], [0], [1], [0, 0, 1, 1], [], []>} : vector<8x128xbf16>, vector<128x128xbf16>, vector<8x128xf32> -> vector<8x128xf32>
      %c0_65 = arith.constant 0 : index
      %c0_66 = arith.constant 0 : index
      %273 = vector.load %arg6[%c0_65, %c0_66] : memref<1x128xf32, #tpu.memory_space<vmem>>, vector<1x128xf32>
      %274 = vector.broadcast %273 : vector<1x128xf32> to vector<8x128xf32>
      %275 = arith.addf %272, %274 : vector<8x128xf32>
      %cst_67 = arith.constant 0.000000e+00 : f32
      %276 = vector.broadcast %cst_67 : f32 to vector<8x128xf32>
      %277 = arith.maximumf %275, %276 : vector<8x128xf32>
      %278 = arith.truncf %277 : vector<8x128xf32> to vector<8x128xbf16>
      %c0_68 = arith.constant 0 : index
      %c0_69 = arith.constant 0 : index
      %279 = vector.load %arg7[%c0_68, %c0_69] : memref<128x128xbf16, #tpu.memory_space<vmem>>, vector<128x128xbf16>
      %cst_70 = arith.constant dense<0.000000e+00> : vector<8x128xf32>
      %280 = tpu.matmul %278, %279, %cst_70 {dimension_numbers = #tpu.dot_dimension_numbers<[1], [0], [0], [1], [0, 0, 1, 1], [], []>} : vector<8x128xbf16>, vector<128x128xbf16>, vector<8x128xf32> -> vector<8x128xf32>
      %c0_71 = arith.constant 0 : index
      %c0_72 = arith.constant 0 : index
      %281 = vector.load %arg8[%c0_71, %c0_72] : memref<1x128xf32, #tpu.memory_space<vmem>>, vector<1x128xf32>
      %282 = vector.broadcast %281 : vector<1x128xf32> to vector<8x128xf32>
      %283 = arith.addf %280, %282 : vector<8x128xf32>
      %c0_73 = arith.constant 0 : index
      %c0_74 = arith.constant 0 : index
      %284 = vector.load %arg9[%c0_73, %c0_74] : memref<8x128xf32, #tpu.memory_space<vmem>>, vector<8x128xf32>
      tpu.vector_store %arg9[%c0_73, %c0_74], %283 {strides = array<i32>} : memref<8x128xf32, #tpu.memory_space<vmem>>, vector<8x128xf32>,
    } else {
    }
    return
  }
  func.func @transform_0(%arg0: i32, %arg1: i32) -> (i32, i32, i32) {
    %c0_i32 = arith.constant 0 : i32
    %c0_i32_0 = arith.constant 0 : i32
    return %arg1, %arg0, %c0_i32 : i32, i32, i32
  }
  func.func @transform_1(%arg0: i32, %arg1: i32) -> (i32, i32) {
    %c0_i32 = arith.constant 0 : i32
    %c0_i32_0 = arith.constant 0 : i32
    %c0_i32_1 = arith.constant 0 : i32
    return %c0_i32, %c0_i32_0 : i32, i32
  }
  func.func @transform_2(%arg0: i32, %arg1: i32) -> (i32, i32) {
    %c0_i32 = arith.constant 0 : i32
    %c0_i32_0 = arith.constant 0 : i32
    %c0_i32_1 = arith.constant 0 : i32
    return %c0_i32, %c0_i32_0 : i32, i32
  }
  func.func @transform_3(%arg0: i32, %arg1: i32) -> (i32, i32) {
    %c0_i32 = arith.constant 0 : i32
    %c0_i32_0 = arith.constant 0 : i32
    %c0_i32_1 = arith.constant 0 : i32
    return %c0_i32, %c0_i32_0 : i32, i32
  }
  func.func @transform_4(%arg0: i32, %arg1: i32) -> (i32, i32) {
    %c0_i32 = arith.constant 0 : i32
    %c0_i32_0 = arith.constant 0 : i32
    %c0_i32_1 = arith.constant 0 : i32
    return %c0_i32, %c0_i32_0 : i32, i32
  }
  func.func @transform_5(%arg0: i32, %arg1: i32) -> (i32, i32) {
    %c0_i32 = arith.constant 0 : i32
    %c0_i32_0 = arith.constant 0 : i32
    %c0_i32_1 = arith.constant 0 : i32
    return %c0_i32, %c0_i32_0 : i32, i32
  }
  func.func @transform_6(%arg0: i32, %arg1: i32) -> (i32, i32) {
    %c0_i32 = arith.constant 0 : i32
    %c0_i32_0 = arith.constant 0 : i32
    %c0_i32_1 = arith.constant 0 : i32
    return %c0_i32, %c0_i32_0 : i32, i32
  }
  func.func @transform_7(%arg0: i32, %arg1: i32) -> (i32, i32) {
    %c0_i32 = arith.constant 0 : i32
    %c0_i32_0 = arith.constant 0 : i32
    return %arg0, %c0_i32 : i32, i32
  }
}

</mosaic_0001>

<llo_original>
// kernel: tpu_custom_call.1
$region0: #{tpu_custom_call.1}
  #allocation0 [shape = 'u32[]', space=smem, size = 0x4, offset = 0x4, fixed_abs, tag = 'smem constant byte address 0x4 - core index']
  #allocation1 [shape = 'u32[144,128]{1,0:T(1,128)}', space=vmem, size = 0x12000, scoped, tag = 'internal scratch']
  #allocation2 [shape = 'f32[8,128]{1,0:T(8,128)}', space=vmem, size = 0x1000, scoped, tag = 'scratch operand']
  #allocation3 [shape = 'f32[8,128]{1,0:T(8,128)}', space=vmem, size = 0x1000, scoped, tag = 'scratch operand']
  %s0 = inlined_call_operand.hbm [shape: f32[8,8,512], index: 0, kind: input, shape index: {}]
  %s1 = inlined_call_operand.hbm [shape: f32[1,512], index: 1, kind: input, shape index: {}]
  %s2 = inlined_call_operand.hbm [shape: bf16[128,512], index: 2, kind: input, shape index: {}]
  %s3 = inlined_call_operand.hbm [shape: bf16[128,128], index: 3, kind: input, shape index: {}]
  %s4 = inlined_call_operand.vmem [shape: f32[1,128], index: 4, kind: input, shape index: {}]
  %s5 = inlined_call_operand.hbm [shape: bf16[128,128], index: 5, kind: input, shape index: {}]
  %s6 = inlined_call_operand.vmem [shape: f32[1,128], index: 6, kind: input, shape index: {}]
  %s7 = inlined_call_operand.hbm [shape: f32[8,128], index: 7, kind: output, shape index: {}]
  %s8 = sld [smem:[#allocation0]]
  $region66: #{tpu_custom_call.1} parent=0
    _
  %s10 = ssub.s32 1, %s8
  %s11 = scalar_select 0, %s10, %s8
  $region1: #{tpu_custom_call.1} parent=0
    #allocation4 [shape = 'u8[131072]{0}', space=vmem, size = 0x20000, scoped, tag = 'input window, operand 0, single buffered']
    #allocation5 [shape = 's32[1]{0}', space=sflag, size = 0x4, scoped, tag = 'scoped memory for tpu_custom_call.1']
    #allocation6 [shape = 's32[1]{0}', space=sflag, size = 0x4, scoped, tag = 'scoped memory for tpu_custom_call.1']
    #allocation7 [shape = 'u8[2048]{0}', space=vmem, size = 0x800, scoped, tag = 'input window, operand 1, single buffered']
    #allocation8 [shape = 's32[1]{0}', space=sflag, size = 0x4, scoped, tag = 'scoped memory for tpu_custom_call.1']
    #allocation9 [shape = 'u8[131072]{0}', space=vmem, size = 0x20000, scoped, tag = 'input window, operand 2, single buffered']
    #allocation10 [shape = 'u8[32768]{0}', space=vmem, size = 0x8000, scoped, tag = 'input window, operand 3, single buffered']
    #allocation11 [shape = 's32[1]{0}', space=sflag, size = 0x4, scoped, tag = 'scoped memory for tpu_custom_call.1']
    #allocation12 [shape = 'u8[32768]{0}', space=vmem, size = 0x8000, scoped, tag = 'input window, operand 5, single buffered']
    #allocation13 [shape = 'u8[4096]{0}', space=vmem, size = 0x1000, scoped, tag = 'output window, operand 0, single buffered']
    %12 = vsyncpa [#allocation5], 0
    %13 = vsyncpa [#allocation8], 0
    %14 = vsyncpa [#allocation11], 0
    %15 = vsyncpa [#allocation6], 0
    // Predicated region
    $region2: #{tpu_custom_call.1} parent=1 // pred_check
      _
    $region3: #{tpu_custom_call.1} parent=1 // pred_check_branch
      %17 = sbr.rel (0) target = $region5
    $region4: #{tpu_custom_call.1} parent=1 // pred_region
      %s19 = ssub.s32 4096, 4096
      %20 = vsyncadd [#allocation5], %s19
      %s21 = sshll.u32 [#allocation4], 4
      %s22 = int_to_ptr.vmem [resolvable:$true] %s21
      %27 = dma.hbm_to_vmem [thread:$0]  %s0, 4096, %s22, [#allocation5], 512, 512, 32
    $region5: #{tpu_custom_call.1} parent=1 // pred_fallthru
      _
    // Predicated region
    $region6: #{tpu_custom_call.1} parent=1 // pred_check
      _
    $region7: #{tpu_custom_call.1} parent=1 // pred_check_branch
      %29 = sbr.rel (0) target = $region9
    $region8: #{tpu_custom_call.1} parent=1 // pred_region
      %s31 = ssub.s32 64, 64
      %32 = vsyncadd [#allocation8], %s31
      %s34 = sshll.u32 [#allocation7], 4
      %s35 = int_to_ptr.vmem [resolvable:$true] %s34
      %37 = dma.hbm_to_vmem [thread:$0]  %s1, 64, %s35, [#allocation8]
    $region9: #{tpu_custom_call.1} parent=1 // pred_fallthru
      _
    // Predicated region
    $region10: #{tpu_custom_call.1} parent=1 // pred_check
      _
    $region11: #{tpu_custom_call.1} parent=1 // pred_check_branch
      %39 = sbr.rel (0) target = $region13
    $region12: #{tpu_custom_call.1} parent=1 // pred_region
      %s41 = ssub.s32 4096, 4096
      %42 = vsyncadd [#allocation8], %s41
      %s43 = sshll.u32 [#allocation9], 4
      %s44 = int_to_ptr.vmem [resolvable:$true] %s43
      %49 = dma.hbm_to_vmem [thread:$0]  %s2, 4096, %s44, [#allocation8], 256, 256, 16
    $region13: #{tpu_custom_call.1} parent=1 // pred_fallthru
      _
    // Predicated region
    $region14: #{tpu_custom_call.1} parent=1 // pred_check
      _
    $region15: #{tpu_custom_call.1} parent=1 // pred_check_branch
      %51 = sbr.rel (0) target = $region17
    $region16: #{tpu_custom_call.1} parent=1 // pred_region
      %s53 = ssub.s32 1024, 1024
      %54 = vsyncadd [#allocation11], %s53
      %s55 = sshll.u32 [#allocation10], 4
      %s56 = int_to_ptr.vmem [resolvable:$true] %s55
      %61 = dma.hbm_to_vmem [thread:$0]  %s3, 1024, %s56, [#allocation11], 64, 64, 4
    $region17: #{tpu_custom_call.1} parent=1 // pred_fallthru
      _
    // Predicated region
    $region18: #{tpu_custom_call.1} parent=1 // pred_check
      _
    $region19: #{tpu_custom_call.1} parent=1 // pred_check_branch
      %63 = sbr.rel (0) target = $region21
    $region20: #{tpu_custom_call.1} parent=1 // pred_region
      _
    $region21: #{tpu_custom_call.1} parent=1 // pred_fallthru
      _
    // Predicated region
    $region22: #{tpu_custom_call.1} parent=1 // pred_check
      _
    $region23: #{tpu_custom_call.1} parent=1 // pred_check_branch
      %65 = sbr.rel (0) target = $region25
    $region24: #{tpu_custom_call.1} parent=1 // pred_region
      %s67 = ssub.s32 1024, 1024
      %68 = vsyncadd [#allocation11], %s67
      %s69 = sshll.u32 [#allocation12], 4
      %s70 = int_to_ptr.vmem [resolvable:$true] %s69
      %75 = dma.hbm_to_vmem [thread:$0]  %s5, 1024, %s70, [#allocation11], 64, 64, 4
    $region25: #{tpu_custom_call.1} parent=1 // pred_fallthru
      _
    // Predicated region
    $region26: #{tpu_custom_call.1} parent=1 // pred_check
      _
    $region27: #{tpu_custom_call.1} parent=1 // pred_check_branch
      %77 = sbr.rel (0) target = $region29
    $region28: #{tpu_custom_call.1} parent=1 // pred_region
      _
    $region29: #{tpu_custom_call.1} parent=1 // pred_fallthru
      _
    // Predicated region
    $region30: #{tpu_custom_call.1} parent=1 // pred_check
      _
    $region31: #{tpu_custom_call.1} parent=1 // pred_check_branch
      %79 = sbr.rel (0) target = $region33
    $region32: #{tpu_custom_call.1} parent=1 // pred_region
      %80 = dma.done [#allocation5], 4096
    $region33: #{tpu_custom_call.1} parent=1 // pred_fallthru
      _
    // Predicated region
    $region34: #{tpu_custom_call.1} parent=1 // pred_check
      _
    $region35: #{tpu_custom_call.1} parent=1 // pred_check_branch
      %82 = sbr.rel (0) target = $region37
    $region36: #{tpu_custom_call.1} parent=1 // pred_region
      %83 = dma.done [#allocation8], 64
    $region37: #{tpu_custom_call.1} parent=1 // pred_fallthru
      _
    // Predicated region
    $region38: #{tpu_custom_call.1} parent=1 // pred_check
      _
    $region39: #{tpu_custom_call.1} parent=1 // pred_check_branch
      %85 = sbr.rel (0) target = $region41
    $region40: #{tpu_custom_call.1} parent=1 // pred_region
      %86 = dma.done [#allocation8], 4096
    $region41: #{tpu_custom_call.1} parent=1 // pred_fallthru
      _
    // Predicated region
    $region42: #{tpu_custom_call.1} parent=1 // pred_check
      _
    $region43: #{tpu_custom_call.1} parent=1 // pred_check_branch
      %88 = sbr.rel (0) target = $region45
    $region44: #{tpu_custom_call.1} parent=1 // pred_region
      %89 = dma.done [#allocation11], 1024
    $region45: #{tpu_custom_call.1} parent=1 // pred_fallthru
      _
    // Predicated region
    $region46: #{tpu_custom_call.1} parent=1 // pred_check
      _
    $region47: #{tpu_custom_call.1} parent=1 // pred_check_branch
      %91 = sbr.rel (0) target = $region49
    $region48: #{tpu_custom_call.1} parent=1 // pred_region
      %92 = dma.done [#allocation11], 1024
    $region49: #{tpu_custom_call.1} parent=1 // pred_fallthru
      _
    %p94 = scmp.eq.s32.totalorder 0, 0
    // Predicated region
    $region50: #{tpu_custom_call.1} parent=1 // pred_check
      %p95 = pneg %p94
    $region51: #{tpu_custom_call.1} parent=1 // pred_check_branch
      %97 = sbr.rel (%p95) target = $region53
    $region52: #{tpu_custom_call.1} parent=1 // pred_region
      %98 = vst [vmem:[#allocation2] sm:$0xff] 0.0
      %99 = vst [vmem:[#allocation3] sm:$0xff] 0.0
    $region53: #{tpu_custom_call.1} parent=1 // pred_fallthru
      _
    %v100 = vld [vmem:[#allocation9] sm:$0xff]
    %v101 = vld [vmem:[#allocation9 + $0x8] sm:$0xff]
    %v102 = vld [vmem:[#allocation9 + $0x10] sm:$0xff]
    %v103 = vld [vmem:[#allocation9 + $0x18] sm:$0xff]
    %v104 = vld [vmem:[#allocation9 + $0x20] sm:$0xff]
    %v105 = vld [vmem:[#allocation9 + $0x28] sm:$0xff]
    %v106 = vld [vmem:[#allocation9 + $0x30] sm:$0xff]
    %v107 = vld [vmem:[#allocation9 + $0x38] sm:$0xff]
    %v108 = vld [vmem:[#allocation9 + $0x40] sm:$0xff]
    %v109 = vld [vmem:[#allocation9 + $0x48] sm:$0xff]
    %v110 = vld [vmem:[#allocation9 + $0x50] sm:$0xff]
    %v111 = vld [vmem:[#allocation9 + $0x58] sm:$0xff]
    %v112 = vld [vmem:[#allocation9 + $0x60] sm:$0xff]
    %v113 = vld [vmem:[#allocation9 + $0x68] sm:$0xff]
    %v114 = vld [vmem:[#allocation9 + $0x70] sm:$0xff]
    %v115 = vld [vmem:[#allocation9 + $0x78] sm:$0xff]
    %v116 = vld [vmem:[#allocation9 + $0x80] sm:$0xff]
    %v117 = vld [vmem:[#allocation9 + $0x88] sm:$0xff]
    %v118 = vld [vmem:[#allocation9 + $0x90] sm:$0xff]
    %v119 = vld [vmem:[#allocation9 + $0x98] sm:$0xff]
    %v120 = vld [vmem:[#allocation9 + $0xa0] sm:$0xff]
    %v121 = vld [vmem:[#allocation9 + $0xa8] sm:$0xff]
    %v122 = vld [vmem:[#allocation9 + $0xb0] sm:$0xff]
    %v123 = vld [vmem:[#allocation9 + $0xb8] sm:$0xff]
    %v124 = vld [vmem:[#allocation9 + $0xc0] sm:$0xff]
    %v125 = vld [vmem:[#allocation9 + $0xc8] sm:$0xff]
    %v126 = vld [vmem:[#allocation9 + $0xd0] sm:$0xff]
    %v127 = vld [vmem:[#allocation9 + $0xd8] sm:$0xff]
    %v128 = vld [vmem:[#allocation9 + $0xe0] sm:$0xff]
    %v129 = vld [vmem:[#allocation9 + $0xe8] sm:$0xff]
    %v130 = vld [vmem:[#allocation9 + $0xf0] sm:$0xff]
    %v131 = vld [vmem:[#allocation9 + $0xf8] sm:$0xff]
    %v132 = vld [vmem:[#allocation7] sm:$0xf]
    %v134 = vlaneseq
    %v135 = vshrl.u32 %v134, 7
    %v136 = vsub.s32 0, %v135
    %v137 = vrot.slane %v132, %v136
    %v138 = vlaneseq
    %v139 = vshrl.u32 %v138, 7
    %v140 = vsub.s32 1, %v139
    %v141 = vrot.slane %v132, %v140
    %v142 = vlaneseq
    %v143 = vshrl.u32 %v142, 7
    %v144 = vsub.s32 2, %v143
    %v145 = vrot.slane %v132, %v144
    %v146 = vlaneseq
    %v147 = vshrl.u32 %v146, 7
    %v148 = vsub.s32 3, %v147
    %v149 = vrot.slane %v132, %v148
    %v154 = vld [vmem:[#allocation2] sm:$0xff]
    %v155 = vld [vmem:[#allocation3] sm:$0xff]
    %v156 = vld [vmem:[#allocation4] sm:$0xff]
    %v157 = vld [vmem:[#allocation4 + $0x8] sm:$0xff]
    %v158 = vld [vmem:[#allocation4 + $0x10] sm:$0xff]
    %v159 = vld [vmem:[#allocation4 + $0x18] sm:$0xff]
    %v160 = vadd.f32 %v156, %v137
    %v161 = vadd.f32 %v157, %v141
    %v162 = vadd.f32 %v158, %v145
    %v163 = vadd.f32 %v159, %v149
    %v164 = vpack.c.bf16 %v154, %v154
    %v197 = vunpack.c.l.b16 %v100
    %v198 = vunpack.c.h.b16 %v100
    %v199 = vunpack.c.l.b16 %v101
    %v200 = vunpack.c.h.b16 %v101
    %v201 = vunpack.c.l.b16 %v102
    %v202 = vunpack.c.h.b16 %v102
    %v203 = vunpack.c.l.b16 %v103
    %v204 = vunpack.c.h.b16 %v103
    %v205 = vunpack.c.l.b16 %v104
    %v206 = vunpack.c.h.b16 %v104
    %v207 = vunpack.c.l.b16 %v105
    %v208 = vunpack.c.h.b16 %v105
    %v209 = vunpack.c.l.b16 %v106
    %v210 = vunpack.c.h.b16 %v106
    %v211 = vunpack.c.l.b16 %v107
    %v212 = vunpack.c.h.b16 %v107
    %v213 = vunpack.c.l.b16 %v108
    %v214 = vunpack.c.h.b16 %v108
    %v215 = vunpack.c.l.b16 %v109
    %v216 = vunpack.c.h.b16 %v109
    %v217 = vunpack.c.l.b16 %v110
    %v218 = vunpack.c.h.b16 %v110
    %v219 = vunpack.c.l.b16 %v111
    %v220 = vunpack.c.h.b16 %v111
    %v221 = vunpack.c.l.b16 %v112
    %v222 = vunpack.c.h.b16 %v112
    %v223 = vunpack.c.l.b16 %v113
    %v224 = vunpack.c.h.b16 %v113
    %v225 = vunpack.c.l.b16 %v114
    %v226 = vunpack.c.h.b16 %v114
    %v227 = vunpack.c.l.b16 %v115
    %v228 = vunpack.c.h.b16 %v115
    %v229 = vunpack.c.l.b16 %v116
    %v230 = vunpack.c.h.b16 %v116
    %v231 = vunpack.c.l.b16 %v117
    %v232 = vunpack.c.h.b16 %v117
    %v233 = vunpack.c.l.b16 %v118
    %v234 = vunpack.c.h.b16 %v118
    %v235 = vunpack.c.l.b16 %v119
    %v236 = vunpack.c.h.b16 %v119
    %v237 = vunpack.c.l.b16 %v120
    %v238 = vunpack.c.h.b16 %v120
    %v239 = vunpack.c.l.b16 %v121
    %v240 = vunpack.c.h.b16 %v121
    %v241 = vunpack.c.l.b16 %v122
    %v242 = vunpack.c.h.b16 %v122
    %v243 = vunpack.c.l.b16 %v123
    %v244 = vunpack.c.h.b16 %v123
    %v245 = vunpack.c.l.b16 %v124
    %v246 = vunpack.c.h.b16 %v124
    %v247 = vunpack.c.l.b16 %v125
    %v248 = vunpack.c.h.b16 %v125
    %v249 = vunpack.c.l.b16 %v126
    %v250 = vunpack.c.h.b16 %v126
    %v251 = vunpack.c.l.b16 %v127
    %v252 = vunpack.c.h.b16 %v127
    %v253 = vunpack.c.l.b16 %v128
    %v254 = vunpack.c.h.b16 %v128
    %v255 = vunpack.c.l.b16 %v129
    %v256 = vunpack.c.h.b16 %v129
    %v257 = vunpack.c.l.b16 %v130
    %v258 = vunpack.c.h.b16 %v130
    %v259 = vunpack.c.l.b16 %v131
    %v260 = vunpack.c.h.b16 %v131
    %v261 = vpack.c.b16 %v201, %v197
    %v262 = vpack.c.b16 %v202, %v198
    %v263 = vpack.c.b16 %v203, %v199
    %v264 = vpack.c.b16 %v204, %v200
    %v265 = vpack.c.b16 %v209, %v205
    %v266 = vpack.c.b16 %v210, %v206
    %v267 = vpack.c.b16 %v211, %v207
    %v268 = vpack.c.b16 %v212, %v208
    %v269 = vpack.c.b16 %v217, %v213
    %v270 = vpack.c.b16 %v218, %v214
    %v271 = vpack.c.b16 %v219, %v215
    %v272 = vpack.c.b16 %v220, %v216
    %v273 = vpack.c.b16 %v225, %v221
    %v274 = vpack.c.b16 %v226, %v222
    %v275 = vpack.c.b16 %v227, %v223
    %v276 = vpack.c.b16 %v228, %v224
    %v277 = vpack.c.b16 %v233, %v229
    %v278 = vpack.c.b16 %v234, %v230
    %v279 = vpack.c.b16 %v235, %v231
    %v280 = vpack.c.b16 %v236, %v232
    %v281 = vpack.c.b16 %v241, %v237
    %v282 = vpack.c.b16 %v242, %v238
    %v283 = vpack.c.b16 %v243, %v239
    %v284 = vpack.c.b16 %v244, %v240
    %v285 = vpack.c.b16 %v249, %v245
    %v286 = vpack.c.b16 %v250, %v246
    %v287 = vpack.c.b16 %v251, %v247
    %v288 = vpack.c.b16 %v252, %v248
    %v289 = vpack.c.b16 %v257, %v253
    %v290 = vpack.c.b16 %v258, %v254
    %v291 = vpack.c.b16 %v259, %v255
    %v292 = vpack.c.b16 %v260, %v256
    %325 = vmatprep.subr.bf16.mxu0 %v290
    %326 = vmatpush1.bf16.msra.mxu0 %v289
    %327 = vmatprep.subr.bf16.mxu0 %v286
    %328 = vmatpush1.bf16.msra.mxu0 %v285
    %329 = vmatprep.subr.bf16.mxu0 %v282
    %330 = vmatpush1.bf16.msra.mxu0 %v281
    %331 = vmatprep.subr.bf16.mxu0 %v278
    %332 = vmatpush1.bf16.msra.mxu0 %v277
    %333 = vmatprep.subr.bf16.mxu0 %v274
    %334 = vmatpush1.bf16.msra.mxu0 %v273
    %335 = vmatprep.subr.bf16.mxu0 %v270
    %336 = vmatpush1.bf16.msra.mxu0 %v269
    %337 = vmatprep.subr.bf16.mxu0 %v266
    %338 = vmatpush1.bf16.msra.mxu0 %v265
    %339 = vmatprep.subr.bf16.mxu0 %v262
    %340 = vmatpush1.bf16.msra.mxu0 %v261
    %341 = vmatprep.subr.bf16.mxu0 0
    %342 = vmatpush2.bf16.msra.mxu0 0
    %343 = vmatprep.subr.bf16.mxu0 0
    %344 = vmatpush2.bf16.msra.mxu0 0
    %345 = vmatprep.subr.bf16.mxu0 0
    %346 = vmatpush2.bf16.msra.mxu0 0
    %347 = vmatprep.subr.bf16.mxu0 0
    %348 = vmatpush2.bf16.msra.mxu0 0
    %349 = vmatprep.subr.bf16.mxu0 0
    %350 = vmatpush2.bf16.msra.mxu0 0
    %351 = vmatprep.subr.bf16.mxu0 0
    %352 = vmatpush2.bf16.msra.mxu0 0
    %353 = vmatprep.subr.bf16.mxu0 0
    %354 = vmatpush2.bf16.msra.mxu0 0
    %355 = vmatprep.subr.bf16.mxu0 0
    %356 = vmatpush2.bf16.msra.mxu0 0
    %357 = vmatprep.mubr.bf16.mxu0 0
    %358 = vmatmul.mubr.bf16.gmra.mxu0 %v164
    %v359 = vpop.f32.mrf.mxu0
    %v360 = vadd.f32 0.0, %v359
    %v361 = vpop.f32.mrf.mxu0
    %v362 = vadd.f32 0.0, %v361
    %v363 = vpop.f32.mrf.mxu0
    %v364 = vpop.f32.mrf.mxu0
    %365 = vdwg.mxu0
    %366 = vmatprep.subr.bf16.mxu0 %v292
    %367 = vmatpush1.bf16.msra.mxu0 %v291
    %368 = vmatprep.subr.bf16.mxu0 %v288
    %369 = vmatpush1.bf16.msra.mxu0 %v287
    %370 = vmatprep.subr.bf16.mxu0 %v284
    %371 = vmatpush1.bf16.msra.mxu0 %v283
    %372 = vmatprep.subr.bf16.mxu0 %v280
    %373 = vmatpush1.bf16.msra.mxu0 %v279
    %374 = vmatprep.subr.bf16.mxu0 %v276
    %375 = vmatpush1.bf16.msra.mxu0 %v275
    %376 = vmatprep.subr.bf16.mxu0 %v272
    %377 = vmatpush1.bf16.msra.mxu0 %v271
    %378 = vmatprep.subr.bf16.mxu0 %v268
    %379 = vmatpush1.bf16.msra.mxu0 %v267
    %380 = vmatprep.subr.bf16.mxu0 %v264
    %381 = vmatpush1.bf16.msra.mxu0 %v263
    %382 = vmatprep.subr.bf16.mxu0 0
    %383 = vmatpush2.bf16.msra.mxu0 0
    %384 = vmatprep.subr.bf16.mxu0 0
    %385 = vmatpush2.bf16.msra.mxu0 0
    %386 = vmatprep.subr.bf16.mxu0 0
    %387 = vmatpush2.bf16.msra.mxu0 0
    %388 = vmatprep.subr.bf16.mxu0 0
    %389 = vmatpush2.bf16.msra.mxu0 0
    %390 = vmatprep.subr.bf16.mxu0 0
    %391 = vmatpush2.bf16.msra.mxu0 0
    %392 = vmatprep.subr.bf16.mxu0 0
    %393 = vmatpush2.bf16.msra.mxu0 0
    %394 = vmatprep.subr.bf16.mxu0 0
    %395 = vmatpush2.bf16.msra.mxu0 0
    %396 = vmatprep.subr.bf16.mxu0 0
    %397 = vmatpush2.bf16.msra.mxu0 0
    %398 = vmatprep.mubr.bf16.mxu0 0
    %399 = vmatmul.mubr.bf16.gmra.mxu0 %v164
    %v400 = vpop.f32.mrf.mxu0
    %v401 = vadd.f32 0.0, %v400
    %v402 = vpop.f32.mrf.mxu0
    %v403 = vadd.f32 0.0, %v402
    %v404 = vpop.f32.mrf.mxu0
    %v405 = vpop.f32.mrf.mxu0
    %406 = vdwg.mxu0
    %v407 = vadd.f32 %v160, %v360
    %v408 = vadd.f32 %v161, %v362
    %v409 = vadd.f32 %v162, %v401
    %v410 = vadd.f32 %v163, %v403
    %v411 = vxor.u32 %v407, 2147483648
    %v412 = vmul.f32 %v411, 1.442695
    %v413 = vpow.pop %v412
    %v414 = vadd.f32 %v413, 1.0
    %v415 = vrcp.pop %v414
    %v416 = vmul.f32 1.0, %v415
    %v417 = vxor.u32 %v408, 2147483648
    %v418 = vmul.f32 %v417, 1.442695
    %v419 = vpow.pop %v418
    %v420 = vadd.f32 %v419, 1.0
    %v421 = vrcp.pop %v420
    %v422 = vmul.f32 1.0, %v421
    %v423 = vtanh.pop %v409
    %v424 = vxor.u32 %v410, 2147483648
    %v425 = vmul.f32 %v424, 1.442695
    %v426 = vpow.pop %v425
    %v427 = vadd.f32 %v426, 1.0
    %v428 = vrcp.pop %v427
    %v429 = vmul.f32 1.0, %v428
    %v430 = vmul.f32 %v422, %v155
    %v431 = vmul.f32 %v416, %v423
    %v432 = vadd.f32 %v430, %v431
    %v433 = vtanh.pop %v432
    %v434 = vmul.f32 %v429, %v433
    %s435 = scalar_lea.vmem [#allocation4], 32
    %v436 = vld [vmem:[%s435] sm:$0xff]
    %v437 = vld [vmem:[%s435 + $0x8] sm:$0xff]
    %v438 = vld [vmem:[%s435 + $0x10] sm:$0xff]
    %v439 = vld [vmem:[%s435 + $0x18] sm:$0xff]
    %v440 = vadd.f32 %v436, %v137
    %v441 = vadd.f32 %v437, %v141
    %v442 = vadd.f32 %v438, %v145
    %v443 = vadd.f32 %v439, %v149
    %v444 = vpack.c.bf16 %v434, %v434
    %445 = vmatprep.subr.bf16.mxu0 %v290
    %446 = vmatpush1.bf16.msra.mxu0 %v289
    %447 = vmatprep.subr.bf16.mxu0 %v286
    %448 = vmatpush1.bf16.msra.mxu0 %v285
    %449 = vmatprep.subr.bf16.mxu0 %v282
    %450 = vmatpush1.bf16.msra.mxu0 %v281
    %451 = vmatprep.subr.bf16.mxu0 %v278
    %452 = vmatpush1.bf16.msra.mxu0 %v277
    %453 = vmatprep.subr.bf16.mxu0 %v274
    %454 = vmatpush1.bf16.msra.mxu0 %v273
    %455 = vmatprep.subr.bf16.mxu0 %v270
    %456 = vmatpush1.bf16.msra.mxu0 %v269
    %457 = vmatprep.subr.bf16.mxu0 %v266
    %458 = vmatpush1.bf16.msra.mxu0 %v265
    %459 = vmatprep.subr.bf16.mxu0 %v262
    %460 = vmatpush1.bf16.msra.mxu0 %v261
    %461 = vmatprep.subr.bf16.mxu0 0
    %462 = vmatpush2.bf16.msra.mxu0 0
    %463 = vmatprep.subr.bf16.mxu0 0
    %464 = vmatpush2.bf16.msra.mxu0 0
    %465 = vmatprep.subr.bf16.mxu0 0
    %466 = vmatpush2.bf16.msra.mxu0 0
    %467 = vmatprep.subr.bf16.mxu0 0
    %468 = vmatpush2.bf16.msra.mxu0 0
    %469 = vmatprep.subr.bf16.mxu0 0
    %470 = vmatpush2.bf16.msra.mxu0 0
    %471 = vmatprep.subr.bf16.mxu0 0
    %472 = vmatpush2.bf16.msra.mxu0 0
    %473 = vmatprep.subr.bf16.mxu0 0
    %474 = vmatpush2.bf16.msra.mxu0 0
    %475 = vmatprep.subr.bf16.mxu0 0
    %476 = vmatpush2.bf16.msra.mxu0 0
    %477 = vmatprep.mubr.bf16.mxu0 0
    %478 = vmatmul.mubr.bf16.gmra.mxu0 %v444
    %v479 = vpop.f32.mrf.mxu0
    %v480 = vadd.f32 0.0, %v479
    %v481 = vpop.f32.mrf.mxu0
    %v482 = vadd.f32 0.0, %v481
    %v483 = vpop.f32.mrf.mxu0
    %v484 = vpop.f32.mrf.mxu0
    %485 = vdwg.mxu0
    %486 = vmatprep.subr.bf16.mxu0 %v292
    %487 = vmatpush1.bf16.msra.mxu0 %v291
    %488 = vmatprep.subr.bf16.mxu0 %v288
    %489 = vmatpush1.bf16.msra.mxu0 %v287
    %490 = vmatprep.subr.bf16.mxu0 %v284
    %491 = vmatpush1.bf16.msra.mxu0 %v283
    %492 = vmatprep.subr.bf16.mxu0 %v280
    %493 = vmatpush1.bf16.msra.mxu0 %v279
    %494 = vmatprep.subr.bf16.mxu0 %v276
    %495 = vmatpush1.bf16.msra.mxu0 %v275
    %496 = vmatprep.subr.bf16.mxu0 %v272
    %497 = vmatpush1.bf16.msra.mxu0 %v271
    %498 = vmatprep.subr.bf16.mxu0 %v268
    %499 = vmatpush1.bf16.msra.mxu0 %v267
    %500 = vmatprep.subr.bf16.mxu0 %v264
    %501 = vmatpush1.bf16.msra.mxu0 %v263
    %502 = vmatprep.subr.bf16.mxu0 0
    %503 = vmatpush2.bf16.msra.mxu0 0
    %504 = vmatprep.subr.bf16.mxu0 0
    %505 = vmatpush2.bf16.msra.mxu0 0
    %506 = vmatprep.subr.bf16.mxu0 0
    %507 = vmatpush2.bf16.msra.mxu0 0
    %508 = vmatprep.subr.bf16.mxu0 0
    %509 = vmatpush2.bf16.msra.mxu0 0
    %510 = vmatprep.subr.bf16.mxu0 0
    %511 = vmatpush2.bf16.msra.mxu0 0
    %512 = vmatprep.subr.bf16.mxu0 0
    %513 = vmatpush2.bf16.msra.mxu0 0
    %514 = vmatprep.subr.bf16.mxu0 0
    %515 = vmatpush2.bf16.msra.mxu0 0
    %516 = vmatprep.subr.bf16.mxu0 0
    %517 = vmatpush2.bf16.msra.mxu0 0
    %518 = vmatprep.mubr.bf16.mxu0 0
    %519 = vmatmul.mubr.bf16.gmra.mxu0 %v444
    %v520 = vpop.f32.mrf.mxu0
    %v521 = vadd.f32 0.0, %v520
    %v522 = vpop.f32.mrf.mxu0
    %v523 = vadd.f32 0.0, %v522
    %v524 = vpop.f32.mrf.mxu0
    %v525 = vpop.f32.mrf.mxu0
    %526 = vdwg.mxu0
    %v527 = vadd.f32 %v440, %v480
    %v528 = vadd.f32 %v441, %v482
    %v529 = vadd.f32 %v442, %v521
    %v530 = vadd.f32 %v443, %v523
    %v531 = vxor.u32 %v527, 2147483648
    %v532 = vmul.f32 %v531, 1.442695
    %v533 = vpow.pop %v532
    %v534 = vadd.f32 %v533, 1.0
    %v535 = vrcp.pop %v534
    %v536 = vmul.f32 1.0, %v535
    %v537 = vxor.u32 %v528, 2147483648
    %v538 = vmul.f32 %v537, 1.442695
    %v539 = vpow.pop %v538
    %v540 = vadd.f32 %v539, 1.0
    %v541 = vrcp.pop %v540
    %v542 = vmul.f32 1.0, %v541
    %v543 = vtanh.pop %v529
    %v544 = vxor.u32 %v530, 2147483648
    %v545 = vmul.f32 %v544, 1.442695
    %v546 = vpow.pop %v545
    %v547 = vadd.f32 %v546, 1.0
    %v548 = vrcp.pop %v547
    %v549 = vmul.f32 1.0, %v548
    %v550 = vmul.f32 %v542, %v432
    %v551 = vmul.f32 %v536, %v543
    %v552 = vadd.f32 %v550, %v551
    %v553 = vtanh.pop %v552
    %v554 = vmul.f32 %v549, %v553
    %s555 = scalar_lea.vmem [#allocation4], 64
    %v556 = vld [vmem:[%s555] sm:$0xff]
    %v557 = vld [vmem:[%s555 + $0x8] sm:$0xff]
    %v558 = vld [vmem:[%s555 + $0x10] sm:$0xff]
    %v559 = vld [vmem:[%s555 + $0x18] sm:$0xff]
    %v560 = vadd.f32 %v556, %v137
    %v561 = vadd.f32 %v557, %v141
    %v562 = vadd.f32 %v558, %v145
    %v563 = vadd.f32 %v559, %v149
    %v564 = vpack.c.bf16 %v554, %v554
    %565 = vmatprep.subr.bf16.mxu0 %v290
    %566 = vmatpush1.bf16.msra.mxu0 %v289
    %567 = vmatprep.subr.bf16.mxu0 %v286
    %568 = vmatpush1.bf16.msra.mxu0 %v285
    %569 = vmatprep.subr.bf16.mxu0 %v282
    %570 = vmatpush1.bf16.msra.mxu0 %v281
    %571 = vmatprep.subr.bf16.mxu0 %v278
    %572 = vmatpush1.bf16.msra.mxu0 %v277
    %573 = vmatprep.subr.bf16.mxu0 %v274
    %574 = vmatpush1.bf16.msra.mxu0 %v273
    %575 = vmatprep.subr.bf16.mxu0 %v270
    %576 = vmatpush1.bf16.msra.mxu0 %v269
    %577 = vmatprep.subr.bf16.mxu0 %v266
    %578 = vmatpush1.bf16.msra.mxu0 %v265
    %579 = vmatprep.subr.bf16.mxu0 %v262
    %580 = vmatpush1.bf16.msra.mxu0 %v261
    %581 = vmatprep.subr.bf16.mxu0 0
    %582 = vmatpush2.bf16.msra.mxu0 0
    %583 = vmatprep.subr.bf16.mxu0 0
    %584 = vmatpush2.bf16.msra.mxu0 0
    %585 = vmatprep.subr.bf16.mxu0 0
    %586 = vmatpush2.bf16.msra.mxu0 0
    %587 = vmatprep.subr.bf16.mxu0 0
    %588 = vmatpush2.bf16.msra.mxu0 0
    %589 = vmatprep.subr.bf16.mxu0 0
    %590 = vmatpush2.bf16.msra.mxu0 0
    %591 = vmatprep.subr.bf16.mxu0 0
    %592 = vmatpush2.bf16.msra.mxu0 0
    %593 = vmatprep.subr.bf16.mxu0 0
    %594 = vmatpush2.bf16.msra.mxu0 0
    %595 = vmatprep.subr.bf16.mxu0 0
    %596 = vmatpush2.bf16.msra.mxu0 0
    %597 = vmatprep.mubr.bf16.mxu0 0
    %598 = vmatmul.mubr.bf16.gmra.mxu0 %v564
    %v599 = vpop.f32.mrf.mxu0
    %v600 = vadd.f32 0.0, %v599
    %v601 = vpop.f32.mrf.mxu0
    %v602 = vadd.f32 0.0, %v601
    %v603 = vpop.f32.mrf.mxu0
    %v604 = vpop.f32.mrf.mxu0
    %605 = vdwg.mxu0
    %606 = vmatprep.subr.bf16.mxu0 %v292
    %607 = vmatpush1.bf16.msra.mxu0 %v291
    %608 = vmatprep.subr.bf16.mxu0 %v288
    %609 = vmatpush1.bf16.msra.mxu0 %v287
    %610 = vmatprep.subr.bf16.mxu0 %v284
    %611 = vmatpush1.bf16.msra.mxu0 %v283
    %612 = vmatprep.subr.bf16.mxu0 %v280
    %613 = vmatpush1.bf16.msra.mxu0 %v279
    %614 = vmatprep.subr.bf16.mxu0 %v276
    %615 = vmatpush1.bf16.msra.mxu0 %v275
    %616 = vmatprep.subr.bf16.mxu0 %v272
    %617 = vmatpush1.bf16.msra.mxu0 %v271
    %618 = vmatprep.subr.bf16.mxu0 %v268
    %619 = vmatpush1.bf16.msra.mxu0 %v267
    %620 = vmatprep.subr.bf16.mxu0 %v264
    %621 = vmatpush1.bf16.msra.mxu0 %v263
    %622 = vmatprep.subr.bf16.mxu0 0
    %623 = vmatpush2.bf16.msra.mxu0 0
    %624 = vmatprep.subr.bf16.mxu0 0
    %625 = vmatpush2.bf16.msra.mxu0 0
    %626 = vmatprep.subr.bf16.mxu0 0
    %627 = vmatpush2.bf16.msra.mxu0 0
    %628 = vmatprep.subr.bf16.mxu0 0
    %629 = vmatpush2.bf16.msra.mxu0 0
    %630 = vmatprep.subr.bf16.mxu0 0
    %631 = vmatpush2.bf16.msra.mxu0 0
    %632 = vmatprep.subr.bf16.mxu0 0
    %633 = vmatpush2.bf16.msra.mxu0 0
    %634 = vmatprep.subr.bf16.mxu0 0
    %635 = vmatpush2.bf16.msra.mxu0 0
    %636 = vmatprep.subr.bf16.mxu0 0
    %637 = vmatpush2.bf16.msra.mxu0 0
    %638 = vmatprep.mubr.bf16.mxu0 0
    %639 = vmatmul.mubr.bf16.gmra.mxu0 %v564
    %v640 = vpop.f32.mrf.mxu0
    %v641 = vadd.f32 0.0, %v640
    %v642 = vpop.f32.mrf.mxu0
    %v643 = vadd.f32 0.0, %v642
    %v644 = vpop.f32.mrf.mxu0
    %v645 = vpop.f32.mrf.mxu0
    %646 = vdwg.mxu0
    %v647 = vadd.f32 %v560, %v600
    %v648 = vadd.f32 %v561, %v602
    %v649 = vadd.f32 %v562, %v641
    %v650 = vadd.f32 %v563, %v643
    %v651 = vxor.u32 %v647, 2147483648
    %v652 = vmul.f32 %v651, 1.442695
    %v653 = vpow.pop %v652
    %v654 = vadd.f32 %v653, 1.0
    %v655 = vrcp.pop %v654
    %v656 = vmul.f32 1.0, %v655
    %v657 = vxor.u32 %v648, 2147483648
    %v658 = vmul.f32 %v657, 1.442695
    %v659 = vpow.pop %v658
    %v660 = vadd.f32 %v659, 1.0
    %v661 = vrcp.pop %v660
    %v662 = vmul.f32 1.0, %v661
    %v663 = vtanh.pop %v649
    %v664 = vxor.u32 %v650, 2147483648
    %v665 = vmul.f32 %v664, 1.442695
    %v666 = vpow.pop %v665
    %v667 = vadd.f32 %v666, 1.0
    %v668 = vrcp.pop %v667
    %v669 = vmul.f32 1.0, %v668
    %v670 = vmul.f32 %v662, %v552
    %v671 = vmul.f32 %v656, %v663
    %v672 = vadd.f32 %v670, %v671
    %v673 = vtanh.pop %v672
    %v674 = vmul.f32 %v669, %v673
    %s675 = scalar_lea.vmem [#allocation4], 96
    %v676 = vld [vmem:[%s675] sm:$0xff]
    %v677 = vld [vmem:[%s675 + $0x8] sm:$0xff]
    %v678 = vld [vmem:[%s675 + $0x10] sm:$0xff]
    %v679 = vld [vmem:[%s675 + $0x18] sm:$0xff]
    %v680 = vadd.f32 %v676, %v137
    %v681 = vadd.f32 %v677, %v141
    %v682 = vadd.f32 %v678, %v145
    %v683 = vadd.f32 %v679, %v149
    %v684 = vpack.c.bf16 %v674, %v674
    %685 = vmatprep.subr.bf16.mxu0 %v290
    %686 = vmatpush1.bf16.msra.mxu0 %v289
    %687 = vmatprep.subr.bf16.mxu0 %v286
    %688 = vmatpush1.bf16.msra.mxu0 %v285
    %689 = vmatprep.subr.bf16.mxu0 %v282
    %690 = vmatpush1.bf16.msra.mxu0 %v281
    %691 = vmatprep.subr.bf16.mxu0 %v278
    %692 = vmatpush1.bf16.msra.mxu0 %v277
    %693 = vmatprep.subr.bf16.mxu0 %v274
    %694 = vmatpush1.bf16.msra.mxu0 %v273
    %695 = vmatprep.subr.bf16.mxu0 %v270
    %696 = vmatpush1.bf16.msra.mxu0 %v269
    %697 = vmatprep.subr.bf16.mxu0 %v266
    %698 = vmatpush1.bf16.msra.mxu0 %v265
    %699 = vmatprep.subr.bf16.mxu0 %v262
    %700 = vmatpush1.bf16.msra.mxu0 %v261
    %701 = vmatprep.subr.bf16.mxu0 0
    %702 = vmatpush2.bf16.msra.mxu0 0
    %703 = vmatprep.subr.bf16.mxu0 0
    %704 = vmatpush2.bf16.msra.mxu0 0
    %705 = vmatprep.subr.bf16.mxu0 0
    %706 = vmatpush2.bf16.msra.mxu0 0
    %707 = vmatprep.subr.bf16.mxu0 0
    %708 = vmatpush2.bf16.msra.mxu0 0
    %709 = vmatprep.subr.bf16.mxu0 0
    %710 = vmatpush2.bf16.msra.mxu0 0
    %711 = vmatprep.subr.bf16.mxu0 0
    %712 = vmatpush2.bf16.msra.mxu0 0
    %713 = vmatprep.subr.bf16.mxu0 0
    %714 = vmatpush2.bf16.msra.mxu0 0
    %715 = vmatprep.subr.bf16.mxu0 0
    %716 = vmatpush2.bf16.msra.mxu0 0
    %717 = vmatprep.mubr.bf16.mxu0 0
    %718 = vmatmul.mubr.bf16.gmra.mxu0 %v684
    %v719 = vpop.f32.mrf.mxu0
    %v720 = vadd.f32 0.0, %v719
    %v721 = vpop.f32.mrf.mxu0
    %v722 = vadd.f32 0.0, %v721
    %v723 = vpop.f32.mrf.mxu0
    %v724 = vpop.f32.mrf.mxu0
    %725 = vdwg.mxu0
    %726 = vmatprep.subr.bf16.mxu0 %v292
    %727 = vmatpush1.bf16.msra.mxu0 %v291
    %728 = vmatprep.subr.bf16.mxu0 %v288
    %729 = vmatpush1.bf16.msra.mxu0 %v287
    %730 = vmatprep.subr.bf16.mxu0 %v284
    %731 = vmatpush1.bf16.msra.mxu0 %v283
    %732 = vmatprep.subr.bf16.mxu0 %v280
    %733 = vmatpush1.bf16.msra.mxu0 %v279
    %734 = vmatprep.subr.bf16.mxu0 %v276
    %735 = vmatpush1.bf16.msra.mxu0 %v275
    %736 = vmatprep.subr.bf16.mxu0 %v272
    %737 = vmatpush1.bf16.msra.mxu0 %v271
    %738 = vmatprep.subr.bf16.mxu0 %v268
    %739 = vmatpush1.bf16.msra.mxu0 %v267
    %740 = vmatprep.subr.bf16.mxu0 %v264
    %741 = vmatpush1.bf16.msra.mxu0 %v263
    %742 = vmatprep.subr.bf16.mxu0 0
    %743 = vmatpush2.bf16.msra.mxu0 0
    %744 = vmatprep.subr.bf16.mxu0 0
    %745 = vmatpush2.bf16.msra.mxu0 0
    %746 = vmatprep.subr.bf16.mxu0 0
    %747 = vmatpush2.bf16.msra.mxu0 0
    %748 = vmatprep.subr.bf16.mxu0 0
    %749 = vmatpush2.bf16.msra.mxu0 0
    %750 = vmatprep.subr.bf16.mxu0 0
    %751 = vmatpush2.bf16.msra.mxu0 0
    %752 = vmatprep.subr.bf16.mxu0 0
    %753 = vmatpush2.bf16.msra.mxu0 0
    %754 = vmatprep.subr.bf16.mxu0 0
    %755 = vmatpush2.bf16.msra.mxu0 0
    %756 = vmatprep.subr.bf16.mxu0 0
    %757 = vmatpush2.bf16.msra.mxu0 0
    %758 = vmatprep.mubr.bf16.mxu0 0
    %759 = vmatmul.mubr.bf16.gmra.mxu0 %v684
    %v760 = vpop.f32.mrf.mxu0
    %v761 = vadd.f32 0.0, %v760
    %v762 = vpop.f32.mrf.mxu0
    %v763 = vadd.f32 0.0, %v762
    %v764 = vpop.f32.mrf.mxu0
    %v765 = vpop.f32.mrf.mxu0
    %766 = vdwg.mxu0
    %v767 = vadd.f32 %v680, %v720
    %v768 = vadd.f32 %v681, %v722
    %v769 = vadd.f32 %v682, %v761
    %v770 = vadd.f32 %v683, %v763
    %v771 = vxor.u32 %v767, 2147483648
    %v772 = vmul.f32 %v771, 1.442695
    %v773 = vpow.pop %v772
    %v774 = vadd.f32 %v773, 1.0
    %v775 = vrcp.pop %v774
    %v776 = vmul.f32 1.0, %v775
    %v777 = vxor.u32 %v768, 2147483648
    %v778 = vmul.f32 %v777, 1.442695
    %v779 = vpow.pop %v778
    %v780 = vadd.f32 %v779, 1.0
    %v781 = vrcp.pop %v780
    %v782 = vmul.f32 1.0, %v781
    %v783 = vtanh.pop %v769
    %v784 = vxor.u32 %v770, 2147483648
    %v785 = vmul.f32 %v784, 1.442695
    %v786 = vpow.pop %v785
    %v787 = vadd.f32 %v786, 1.0
    %v788 = vrcp.pop %v787
    %v789 = vmul.f32 1.0, %v788
    %v790 = vmul.f32 %v782, %v672
    %v791 = vmul.f32 %v776, %v783
    %v792 = vadd.f32 %v790, %v791
    %v793 = vtanh.pop %v792
    %v794 = vmul.f32 %v789, %v793
    %s795 = scalar_lea.vmem [#allocation4], 128
    %v796 = vld [vmem:[%s795] sm:$0xff]
    %v797 = vld [vmem:[%s795 + $0x8] sm:$0xff]
    %v798 = vld [vmem:[%s795 + $0x10] sm:$0xff]
    %v799 = vld [vmem:[%s795 + $0x18] sm:$0xff]
    %v800 = vadd.f32 %v796, %v137
    %v801 = vadd.f32 %v797, %v141
    %v802 = vadd.f32 %v798, %v145
    %v803 = vadd.f32 %v799, %v149
    %v804 = vpack.c.bf16 %v794, %v794
    %805 = vmatprep.subr.bf16.mxu0 %v290
    %806 = vmatpush1.bf16.msra.mxu0 %v289
    %807 = vmatprep.subr.bf16.mxu0 %v286
    %808 = vmatpush1.bf16.msra.mxu0 %v285
    %809 = vmatprep.subr.bf16.mxu0 %v282
    %810 = vmatpush1.bf16.msra.mxu0 %v281
    %811 = vmatprep.subr.bf16.mxu0 %v278
    %812 = vmatpush1.bf16.msra.mxu0 %v277
    %813 = vmatprep.subr.bf16.mxu0 %v274
    %814 = vmatpush1.bf16.msra.mxu0 %v273
    %815 = vmatprep.subr.bf16.mxu0 %v270
    %816 = vmatpush1.bf16.msra.mxu0 %v269
    %817 = vmatprep.subr.bf16.mxu0 %v266
    %818 = vmatpush1.bf16.msra.mxu0 %v265
    %819 = vmatprep.subr.bf16.mxu0 %v262
    %820 = vmatpush1.bf16.msra.mxu0 %v261
    %821 = vmatprep.subr.bf16.mxu0 0
    %822 = vmatpush2.bf16.msra.mxu0 0
    %823 = vmatprep.subr.bf16.mxu0 0
    %824 = vmatpush2.bf16.msra.mxu0 0
    %825 = vmatprep.subr.bf16.mxu0 0
    %826 = vmatpush2.bf16.msra.mxu0 0
    %827 = vmatprep.subr.bf16.mxu0 0
    %828 = vmatpush2.bf16.msra.mxu0 0
    %829 = vmatprep.subr.bf16.mxu0 0
    %830 = vmatpush2.bf16.msra.mxu0 0
    %831 = vmatprep.subr.bf16.mxu0 0
    %832 = vmatpush2.bf16.msra.mxu0 0
    %833 = vmatprep.subr.bf16.mxu0 0
    %834 = vmatpush2.bf16.msra.mxu0 0
    %835 = vmatprep.subr.bf16.mxu0 0
    %836 = vmatpush2.bf16.msra.mxu0 0
    %837 = vmatprep.mubr.bf16.mxu0 0
    %838 = vmatmul.mubr.bf16.gmra.mxu0 %v804
    %v839 = vpop.f32.mrf.mxu0
    %v840 = vadd.f32 0.0, %v839
    %v841 = vpop.f32.mrf.mxu0
    %v842 = vadd.f32 0.0, %v841
    %v843 = vpop.f32.mrf.mxu0
    %v844 = vpop.f32.mrf.mxu0
    %845 = vdwg.mxu0
    %846 = vmatprep.subr.bf16.mxu0 %v292
    %847 = vmatpush1.bf16.msra.mxu0 %v291
    %848 = vmatprep.subr.bf16.mxu0 %v288
    %849 = vmatpush1.bf16.msra.mxu0 %v287
    %850 = vmatprep.subr.bf16.mxu0 %v284
    %851 = vmatpush1.bf16.msra.mxu0 %v283
    %852 = vmatprep.subr.bf16.mxu0 %v280
    %853 = vmatpush1.bf16.msra.mxu0 %v279
    %854 = vmatprep.subr.bf16.mxu0 %v276
    %855 = vmatpush1.bf16.msra.mxu0 %v275
    %856 = vmatprep.subr.bf16.mxu0 %v272
    %857 = vmatpush1.bf16.msra.mxu0 %v271
    %858 = vmatprep.subr.bf16.mxu0 %v268
    %859 = vmatpush1.bf16.msra.mxu0 %v267
    %860 = vmatprep.subr.bf16.mxu0 %v264
    %861 = vmatpush1.bf16.msra.mxu0 %v263
    %862 = vmatprep.subr.bf16.mxu0 0
    %863 = vmatpush2.bf16.msra.mxu0 0
    %864 = vmatprep.subr.bf16.mxu0 0
    %865 = vmatpush2.bf16.msra.mxu0 0
    %866 = vmatprep.subr.bf16.mxu0 0
    %867 = vmatpush2.bf16.msra.mxu0 0
    %868 = vmatprep.subr.bf16.mxu0 0
    %869 = vmatpush2.bf16.msra.mxu0 0
    %870 = vmatprep.subr.bf16.mxu0 0
    %871 = vmatpush2.bf16.msra.mxu0 0
    %872 = vmatprep.subr.bf16.mxu0 0
    %873 = vmatpush2.bf16.msra.mxu0 0
    %874 = vmatprep.subr.bf16.mxu0 0
    %875 = vmatpush2.bf16.msra.mxu0 0
    %876 = vmatprep.subr.bf16.mxu0 0
    %877 = vmatpush2.bf16.msra.mxu0 0
    %878 = vmatprep.mubr.bf16.mxu0 0
    %879 = vmatmul.mubr.bf16.gmra.mxu0 %v804
    %v880 = vpop.f32.mrf.mxu0
    %v881 = vadd.f32 0.0, %v880
    %v882 = vpop.f32.mrf.mxu0
    %v883 = vadd.f32 0.0, %v882
    %v884 = vpop.f32.mrf.mxu0
    %v885 = vpop.f32.mrf.mxu0
    %886 = vdwg.mxu0
    %v887 = vadd.f32 %v800, %v840
    %v888 = vadd.f32 %v801, %v842
    %v889 = vadd.f32 %v802, %v881
    %v890 = vadd.f32 %v803, %v883
    %v891 = vxor.u32 %v887, 2147483648
    %v892 = vmul.f32 %v891, 1.442695
    %v893 = vpow.pop %v892
    %v894 = vadd.f32 %v893, 1.0
    %v895 = vrcp.pop %v894
    %v896 = vmul.f32 1.0, %v895
    %v897 = vxor.u32 %v888, 2147483648
    %v898 = vmul.f32 %v897, 1.442695
    %v899 = vpow.pop %v898
    %v900 = vadd.f32 %v899, 1.0
    %v901 = vrcp.pop %v900
    %v902 = vmul.f32 1.0, %v901
    %v903 = vtanh.pop %v889
    %v904 = vxor.u32 %v890, 2147483648
    %v905 = vmul.f32 %v904, 1.442695
    %v906 = vpow.pop %v905
    %v907 = vadd.f32 %v906, 1.0
    %v908 = vrcp.pop %v907
    %v909 = vmul.f32 1.0, %v908
    %v910 = vmul.f32 %v902, %v792
    %v911 = vmul.f32 %v896, %v903
    %v912 = vadd.f32 %v910, %v911
    %v913 = vtanh.pop %v912
    %v914 = vmul.f32 %v909, %v913
    %s915 = scalar_lea.vmem [#allocation4], 160
    %v916 = vld [vmem:[%s915] sm:$0xff]
    %v917 = vld [vmem:[%s915 + $0x8] sm:$0xff]
    %v918 = vld [vmem:[%s915 + $0x10] sm:$0xff]
    %v919 = vld [vmem:[%s915 + $0x18] sm:$0xff]
    %v920 = vadd.f32 %v916, %v137
    %v921 = vadd.f32 %v917, %v141
    %v922 = vadd.f32 %v918, %v145
    %v923 = vadd.f32 %v919, %v149
    %v924 = vpack.c.bf16 %v914, %v914
    %925 = vmatprep.subr.bf16.mxu0 %v290
    %926 = vmatpush1.bf16.msra.mxu0 %v289
    %927 = vmatprep.subr.bf16.mxu0 %v286
    %928 = vmatpush1.bf16.msra.mxu0 %v285
    %929 = vmatprep.subr.bf16.mxu0 %v282
    %930 = vmatpush1.bf16.msra.mxu0 %v281
    %931 = vmatprep.subr.bf16.mxu0 %v278
    %932 = vmatpush1.bf16.msra.mxu0 %v277
    %933 = vmatprep.subr.bf16.mxu0 %v274
    %934 = vmatpush1.bf16.msra.mxu0 %v273
    %935 = vmatprep.subr.bf16.mxu0 %v270
    %936 = vmatpush1.bf16.msra.mxu0 %v269
    %937 = vmatprep.subr.bf16.mxu0 %v266
    %938 = vmatpush1.bf16.msra.mxu0 %v265
    %939 = vmatprep.subr.bf16.mxu0 %v262
    %940 = vmatpush1.bf16.msra.mxu0 %v261
    %941 = vmatprep.subr.bf16.mxu0 0
    %942 = vmatpush2.bf16.msra.mxu0 0
    %943 = vmatprep.subr.bf16.mxu0 0
    %944 = vmatpush2.bf16.msra.mxu0 0
    %945 = vmatprep.subr.bf16.mxu0 0
    %946 = vmatpush2.bf16.msra.mxu0 0
    %947 = vmatprep.subr.bf16.mxu0 0
    %948 = vmatpush2.bf16.msra.mxu0 0
    %949 = vmatprep.subr.bf16.mxu0 0
    %950 = vmatpush2.bf16.msra.mxu0 0
    %951 = vmatprep.subr.bf16.mxu0 0
    %952 = vmatpush2.bf16.msra.mxu0 0
    %953 = vmatprep.subr.bf16.mxu0 0
    %954 = vmatpush2.bf16.msra.mxu0 0
    %955 = vmatprep.subr.bf16.mxu0 0
    %956 = vmatpush2.bf16.msra.mxu0 0
    %957 = vmatprep.mubr.bf16.mxu0 0
    %958 = vmatmul.mubr.bf16.gmra.mxu0 %v924
    %v959 = vpop.f32.mrf.mxu0
    %v960 = vadd.f32 0.0, %v959
    %v961 = vpop.f32.mrf.mxu0
    %v962 = vadd.f32 0.0, %v961
    %v963 = vpop.f32.mrf.mxu0
    %v964 = vpop.f32.mrf.mxu0
    %965 = vdwg.mxu0
    %966 = vmatprep.subr.bf16.mxu0 %v292
    %967 = vmatpush1.bf16.msra.mxu0 %v291
    %968 = vmatprep.subr.bf16.mxu0 %v288
    %969 = vmatpush1.bf16.msra.mxu0 %v287
    %970 = vmatprep.subr.bf16.mxu0 %v284
    %971 = vmatpush1.bf16.msra.mxu0 %v283
    %972 = vmatprep.subr.bf16.mxu0 %v280
    %973 = vmatpush1.bf16.msra.mxu0 %v279
    %974 = vmatprep.subr.bf16.mxu0 %v276
    %975 = vmatpush1.bf16.msra.mxu0 %v275
    %976 = vmatprep.subr.bf16.mxu0 %v272
    %977 = vmatpush1.bf16.msra.mxu0 %v271
    %978 = vmatprep.subr.bf16.mxu0 %v268
    %979 = vmatpush1.bf16.msra.mxu0 %v267
    %980 = vmatprep.subr.bf16.mxu0 %v264
    %981 = vmatpush1.bf16.msra.mxu0 %v263
    %982 = vmatprep.subr.bf16.mxu0 0
    %983 = vmatpush2.bf16.msra.mxu0 0
    %984 = vmatprep.subr.bf16.mxu0 0
    %985 = vmatpush2.bf16.msra.mxu0 0
    %986 = vmatprep.subr.bf16.mxu0 0
    %987 = vmatpush2.bf16.msra.mxu0 0
    %988 = vmatprep.subr.bf16.mxu0 0
    %989 = vmatpush2.bf16.msra.mxu0 0
    %990 = vmatprep.subr.bf16.mxu0 0
    %991 = vmatpush2.bf16.msra.mxu0 0
    %992 = vmatprep.subr.bf16.mxu0 0
    %993 = vmatpush2.bf16.msra.mxu0 0
    %994 = vmatprep.subr.bf16.mxu0 0
    %995 = vmatpush2.bf16.msra.mxu0 0
    %996 = vmatprep.subr.bf16.mxu0 0
    %997 = vmatpush2.bf16.msra.mxu0 0
    %998 = vmatprep.mubr.bf16.mxu0 0
    %999 = vmatmul.mubr.bf16.gmra.mxu0 %v924
    %v1000 = vpop.f32.mrf.mxu0
    %v1001 = vadd.f32 0.0, %v1000
    %v1002 = vpop.f32.mrf.mxu0
    %v1003 = vadd.f32 0.0, %v1002
    %v1004 = vpop.f32.mrf.mxu0
    %v1005 = vpop.f32.mrf.mxu0
    %1006 = vdwg.mxu0
    %v1007 = vadd.f32 %v920, %v960
    %v1008 = vadd.f32 %v921, %v962
    %v1009 = vadd.f32 %v922, %v1001
    %v1010 = vadd.f32 %v923, %v1003
    %v1011 = vxor.u32 %v1007, 2147483648
    %v1012 = vmul.f32 %v1011, 1.442695
    %v1013 = vpow.pop %v1012
    %v1014 = vadd.f32 %v1013, 1.0
    %v1015 = vrcp.pop %v1014
    %v1016 = vmul.f32 1.0, %v1015
    %v1017 = vxor.u32 %v1008, 2147483648
    %v1018 = vmul.f32 %v1017, 1.442695
    %v1019 = vpow.pop %v1018
    %v1020 = vadd.f32 %v1019, 1.0
    %v1021 = vrcp.pop %v1020
    %v1022 = vmul.f32 1.0, %v1021
    %v1023 = vtanh.pop %v1009
    %v1024 = vxor.u32 %v1010, 2147483648
    %v1025 = vmul.f32 %v1024, 1.442695
    %v1026 = vpow.pop %v1025
    %v1027 = vadd.f32 %v1026, 1.0
    %v1028 = vrcp.pop %v1027
    %v1029 = vmul.f32 1.0, %v1028
    %v1030 = vmul.f32 %v1022, %v912
    %v1031 = vmul.f32 %v1016, %v1023
    %v1032 = vadd.f32 %v1030, %v1031
    %v1033 = vtanh.pop %v1032
    %v1034 = vmul.f32 %v1029, %v1033
    %s1035 = scalar_lea.vmem [#allocation4], 192
    %v1036 = vld [vmem:[%s1035] sm:$0xff]
    %v1037 = vld [vmem:[%s1035 + $0x8] sm:$0xff]
    %v1038 = vld [vmem:[%s1035 + $0x10] sm:$0xff]
    %v1039 = vld [vmem:[%s1035 + $0x18] sm:$0xff]
    %v1040 = vadd.f32 %v1036, %v137
    %v1041 = vadd.f32 %v1037, %v141
    %v1042 = vadd.f32 %v1038, %v145
    %v1043 = vadd.f32 %v1039, %v149
    %v1044 = vpack.c.bf16 %v1034, %v1034
    %1045 = vmatprep.subr.bf16.mxu0 %v290
    %1046 = vmatpush1.bf16.msra.mxu0 %v289
    %1047 = vmatprep.subr.bf16.mxu0 %v286
    %1048 = vmatpush1.bf16.msra.mxu0 %v285
    %1049 = vmatprep.subr.bf16.mxu0 %v282
    %1050 = vmatpush1.bf16.msra.mxu0 %v281
    %1051 = vmatprep.subr.bf16.mxu0 %v278
    %1052 = vmatpush1.bf16.msra.mxu0 %v277
    %1053 = vmatprep.subr.bf16.mxu0 %v274
    %1054 = vmatpush1.bf16.msra.mxu0 %v273
    %1055 = vmatprep.subr.bf16.mxu0 %v270
    %1056 = vmatpush1.bf16.msra.mxu0 %v269
    %1057 = vmatprep.subr.bf16.mxu0 %v266
    %1058 = vmatpush1.bf16.msra.mxu0 %v265
    %1059 = vmatprep.subr.bf16.mxu0 %v262
    %1060 = vmatpush1.bf16.msra.mxu0 %v261
    %1061 = vmatprep.subr.bf16.mxu0 0
    %1062 = vmatpush2.bf16.msra.mxu0 0
    %1063 = vmatprep.subr.bf16.mxu0 0
    %1064 = vmatpush2.bf16.msra.mxu0 0
    %1065 = vmatprep.subr.bf16.mxu0 0
    %1066 = vmatpush2.bf16.msra.mxu0 0
    %1067 = vmatprep.subr.bf16.mxu0 0
    %1068 = vmatpush2.bf16.msra.mxu0 0
    %1069 = vmatprep.subr.bf16.mxu0 0
    %1070 = vmatpush2.bf16.msra.mxu0 0
    %1071 = vmatprep.subr.bf16.mxu0 0
    %1072 = vmatpush2.bf16.msra.mxu0 0
    %1073 = vmatprep.subr.bf16.mxu0 0
    %1074 = vmatpush2.bf16.msra.mxu0 0
    %1075 = vmatprep.subr.bf16.mxu0 0
    %1076 = vmatpush2.bf16.msra.mxu0 0
    %1077 = vmatprep.mubr.bf16.mxu0 0
    %1078 = vmatmul.mubr.bf16.gmra.mxu0 %v1044
    %v1079 = vpop.f32.mrf.mxu0
    %v1080 = vadd.f32 0.0, %v1079
    %v1081 = vpop.f32.mrf.mxu0
    %v1082 = vadd.f32 0.0, %v1081
    %v1083 = vpop.f32.mrf.mxu0
    %v1084 = vpop.f32.mrf.mxu0
    %1085 = vdwg.mxu0
    %1086 = vmatprep.subr.bf16.mxu0 %v292
    %1087 = vmatpush1.bf16.msra.mxu0 %v291
    %1088 = vmatprep.subr.bf16.mxu0 %v288
    %1089 = vmatpush1.bf16.msra.mxu0 %v287
    %1090 = vmatprep.subr.bf16.mxu0 %v284
    %1091 = vmatpush1.bf16.msra.mxu0 %v283
    %1092 = vmatprep.subr.bf16.mxu0 %v280
    %1093 = vmatpush1.bf16.msra.mxu0 %v279
    %1094 = vmatprep.subr.bf16.mxu0 %v276
    %1095 = vmatpush1.bf16.msra.mxu0 %v275
    %1096 = vmatprep.subr.bf16.mxu0 %v272
    %1097 = vmatpush1.bf16.msra.mxu0 %v271
    %1098 = vmatprep.subr.bf16.mxu0 %v268
    %1099 = vmatpush1.bf16.msra.mxu0 %v267
    %1100 = vmatprep.subr.bf16.mxu0 %v264
    %1101 = vmatpush1.bf16.msra.mxu0 %v263
    %1102 = vmatprep.subr.bf16.mxu0 0
    %1103 = vmatpush2.bf16.msra.mxu0 0
    %1104 = vmatprep.subr.bf16.mxu0 0
    %1105 = vmatpush2.bf16.msra.mxu0 0
    %1106 = vmatprep.subr.bf16.mxu0 0
    %1107 = vmatpush2.bf16.msra.mxu0 0
    %1108 = vmatprep.subr.bf16.mxu0 0
    %1109 = vmatpush2.bf16.msra.mxu0 0
    %1110 = vmatprep.subr.bf16.mxu0 0
    %1111 = vmatpush2.bf16.msra.mxu0 0
    %1112 = vmatprep.subr.bf16.mxu0 0
    %1113 = vmatpush2.bf16.msra.mxu0 0
    %1114 = vmatprep.subr.bf16.mxu0 0
    %1115 = vmatpush2.bf16.msra.mxu0 0
    %1116 = vmatprep.subr.bf16.mxu0 0
    %1117 = vmatpush2.bf16.msra.mxu0 0
    %1118 = vmatprep.mubr.bf16.mxu0 0
    %1119 = vmatmul.mubr.bf16.gmra.mxu0 %v1044
    %v1120 = vpop.f32.mrf.mxu0
    %v1121 = vadd.f32 0.0, %v1120
    %v1122 = vpop.f32.mrf.mxu0
    %v1123 = vadd.f32 0.0, %v1122
    %v1124 = vpop.f32.mrf.mxu0
    %v1125 = vpop.f32.mrf.mxu0
    %1126 = vdwg.mxu0
    %v1127 = vadd.f32 %v1040, %v1080
    %v1128 = vadd.f32 %v1041, %v1082
    %v1129 = vadd.f32 %v1042, %v1121
    %v1130 = vadd.f32 %v1043, %v1123
    %v1131 = vxor.u32 %v1127, 2147483648
    %v1132 = vmul.f32 %v1131, 1.442695
    %v1133 = vpow.pop %v1132
    %v1134 = vadd.f32 %v1133, 1.0
    %v1135 = vrcp.pop %v1134
    %v1136 = vmul.f32 1.0, %v1135
    %v1137 = vxor.u32 %v1128, 2147483648
    %v1138 = vmul.f32 %v1137, 1.442695
    %v1139 = vpow.pop %v1138
    %v1140 = vadd.f32 %v1139, 1.0
    %v1141 = vrcp.pop %v1140
    %v1142 = vmul.f32 1.0, %v1141
    %v1143 = vtanh.pop %v1129
    %v1144 = vxor.u32 %v1130, 2147483648
    %v1145 = vmul.f32 %v1144, 1.442695
    %v1146 = vpow.pop %v1145
    %v1147 = vadd.f32 %v1146, 1.0
    %v1148 = vrcp.pop %v1147
    %v1149 = vmul.f32 1.0, %v1148
    %v1150 = vmul.f32 %v1142, %v1032
    %v1151 = vmul.f32 %v1136, %v1143
    %v1152 = vadd.f32 %v1150, %v1151
    %v1153 = vtanh.pop %v1152
    %v1154 = vmul.f32 %v1149, %v1153
    %s1155 = scalar_lea.vmem [#allocation4], 224
    %v1156 = vld [vmem:[%s1155] sm:$0xff]
    %v1157 = vld [vmem:[%s1155 + $0x8] sm:$0xff]
    %v1158 = vld [vmem:[%s1155 + $0x10] sm:$0xff]
    %v1159 = vld [vmem:[%s1155 + $0x18] sm:$0xff]
    %v1160 = vadd.f32 %v1156, %v137
    %v1161 = vadd.f32 %v1157, %v141
    %v1162 = vadd.f32 %v1158, %v145
    %v1163 = vadd.f32 %v1159, %v149
    %v1164 = vpack.c.bf16 %v1154, %v1154
    %1165 = vmatprep.subr.bf16.mxu0 %v290
    %1166 = vmatpush1.bf16.msra.mxu0 %v289
    %1167 = vmatprep.subr.bf16.mxu0 %v286
    %1168 = vmatpush1.bf16.msra.mxu0 %v285
    %1169 = vmatprep.subr.bf16.mxu0 %v282
    %1170 = vmatpush1.bf16.msra.mxu0 %v281
    %1171 = vmatprep.subr.bf16.mxu0 %v278
    %1172 = vmatpush1.bf16.msra.mxu0 %v277
    %1173 = vmatprep.subr.bf16.mxu0 %v274
    %1174 = vmatpush1.bf16.msra.mxu0 %v273
    %1175 = vmatprep.subr.bf16.mxu0 %v270
    %1176 = vmatpush1.bf16.msra.mxu0 %v269
    %1177 = vmatprep.subr.bf16.mxu0 %v266
    %1178 = vmatpush1.bf16.msra.mxu0 %v265
    %1179 = vmatprep.subr.bf16.mxu0 %v262
    %1180 = vmatpush1.bf16.msra.mxu0 %v261
    %1181 = vmatprep.subr.bf16.mxu0 0
    %1182 = vmatpush2.bf16.msra.mxu0 0
    %1183 = vmatprep.subr.bf16.mxu0 0
    %1184 = vmatpush2.bf16.msra.mxu0 0
    %1185 = vmatprep.subr.bf16.mxu0 0
    %1186 = vmatpush2.bf16.msra.mxu0 0
    %1187 = vmatprep.subr.bf16.mxu0 0
    %1188 = vmatpush2.bf16.msra.mxu0 0
    %1189 = vmatprep.subr.bf16.mxu0 0
    %1190 = vmatpush2.bf16.msra.mxu0 0
    %1191 = vmatprep.subr.bf16.mxu0 0
    %1192 = vmatpush2.bf16.msra.mxu0 0
    %1193 = vmatprep.subr.bf16.mxu0 0
    %1194 = vmatpush2.bf16.msra.mxu0 0
    %1195 = vmatprep.subr.bf16.mxu0 0
    %1196 = vmatpush2.bf16.msra.mxu0 0
    %1197 = vmatprep.mubr.bf16.mxu0 0
    %1198 = vmatmul.mubr.bf16.gmra.mxu0 %v1164
    %v1199 = vpop.f32.mrf.mxu0
    %v1200 = vadd.f32 0.0, %v1199
    %v1201 = vpop.f32.mrf.mxu0
    %v1202 = vadd.f32 0.0, %v1201
    %v1203 = vpop.f32.mrf.mxu0
    %v1204 = vpop.f32.mrf.mxu0
    %1205 = vdwg.mxu0
    %1206 = vmatprep.subr.bf16.mxu0 %v292
    %1207 = vmatpush1.bf16.msra.mxu0 %v291
    %1208 = vmatprep.subr.bf16.mxu0 %v288
    %1209 = vmatpush1.bf16.msra.mxu0 %v287
    %1210 = vmatprep.subr.bf16.mxu0 %v284
    %1211 = vmatpush1.bf16.msra.mxu0 %v283
    %1212 = vmatprep.subr.bf16.mxu0 %v280
    %1213 = vmatpush1.bf16.msra.mxu0 %v279
    %1214 = vmatprep.subr.bf16.mxu0 %v276
    %1215 = vmatpush1.bf16.msra.mxu0 %v275
    %1216 = vmatprep.subr.bf16.mxu0 %v272
    %1217 = vmatpush1.bf16.msra.mxu0 %v271
    %1218 = vmatprep.subr.bf16.mxu0 %v268
    %1219 = vmatpush1.bf16.msra.mxu0 %v267
    %1220 = vmatprep.subr.bf16.mxu0 %v264
    %1221 = vmatpush1.bf16.msra.mxu0 %v263
    %1222 = vmatprep.subr.bf16.mxu0 0
    %1223 = vmatpush2.bf16.msra.mxu0 0
    %1224 = vmatprep.subr.bf16.mxu0 0
    %1225 = vmatpush2.bf16.msra.mxu0 0
    %1226 = vmatprep.subr.bf16.mxu0 0
    %1227 = vmatpush2.bf16.msra.mxu0 0
    %1228 = vmatprep.subr.bf16.mxu0 0
    %1229 = vmatpush2.bf16.msra.mxu0 0
    %1230 = vmatprep.subr.bf16.mxu0 0
    %1231 = vmatpush2.bf16.msra.mxu0 0
    %1232 = vmatprep.subr.bf16.mxu0 0
    %1233 = vmatpush2.bf16.msra.mxu0 0
    %1234 = vmatprep.subr.bf16.mxu0 0
    %1235 = vmatpush2.bf16.msra.mxu0 0
    %1236 = vmatprep.subr.bf16.mxu0 0
    %1237 = vmatpush2.bf16.msra.mxu0 0
    %1238 = vmatprep.mubr.bf16.mxu0 0
    %1239 = vmatmul.mubr.bf16.gmra.mxu0 %v1164
    %v1240 = vpop.f32.mrf.mxu0
    %v1241 = vadd.f32 0.0, %v1240
    %v1242 = vpop.f32.mrf.mxu0
    %v1243 = vadd.f32 0.0, %v1242
    %v1244 = vpop.f32.mrf.mxu0
    %v1245 = vpop.f32.mrf.mxu0
    %1246 = vdwg.mxu0
    %v1247 = vadd.f32 %v1160, %v1200
    %v1248 = vadd.f32 %v1161, %v1202
    %v1249 = vadd.f32 %v1162, %v1241
    %v1250 = vadd.f32 %v1163, %v1243
    %v1251 = vxor.u32 %v1247, 2147483648
    %v1252 = vmul.f32 %v1251, 1.442695
    %v1253 = vpow.pop %v1252
    %v1254 = vadd.f32 %v1253, 1.0
    %v1255 = vrcp.pop %v1254
    %v1256 = vmul.f32 1.0, %v1255
    %v1257 = vxor.u32 %v1248, 2147483648
    %v1258 = vmul.f32 %v1257, 1.442695
    %v1259 = vpow.pop %v1258
    %v1260 = vadd.f32 %v1259, 1.0
    %v1261 = vrcp.pop %v1260
    %v1262 = vmul.f32 1.0, %v1261
    %v1263 = vtanh.pop %v1249
    %v1264 = vxor.u32 %v1250, 2147483648
    %v1265 = vmul.f32 %v1264, 1.442695
    %v1266 = vpow.pop %v1265
    %v1267 = vadd.f32 %v1266, 1.0
    %v1268 = vrcp.pop %v1267
    %v1269 = vmul.f32 1.0, %v1268
    %v1270 = vmul.f32 %v1262, %v1152
    %v1271 = vmul.f32 %v1256, %v1263
    %v1272 = vadd.f32 %v1270, %v1271
    %v1273 = vtanh.pop %v1272
    %v1274 = vmul.f32 %v1269, %v1273
    %1275 = vst [vmem:[#allocation2] sm:$0xff] %v1274
    %1276 = vst [vmem:[#allocation3] sm:$0xff] %v1272
    // Predicated region
    $region54: #{tpu_custom_call.1} parent=1 // pred_check
      %p1277 = pneg %p94
    $region55: #{tpu_custom_call.1} parent=1 // pred_check_branch
      %1279 = sbr.rel (%p1277) target = $region57
    $region56: #{tpu_custom_call.1} parent=1 // pred_region
      %v1280 = vpack.c.bf16 %v1274, %v1274
      %v1281 = vld [vmem:[#allocation10] sm:$0xf]
      %v1282 = vld [vmem:[#allocation10 + $0x4] sm:$0xf]
      %v1283 = vld [vmem:[#allocation10 + $0x8] sm:$0xf]
      %v1284 = vld [vmem:[#allocation10 + $0xc] sm:$0xf]
      %v1285 = vld [vmem:[#allocation10 + $0x10] sm:$0xf]
      %v1286 = vld [vmem:[#allocation10 + $0x14] sm:$0xf]
      %v1287 = vld [vmem:[#allocation10 + $0x18] sm:$0xf]
      %v1288 = vld [vmem:[#allocation10 + $0x1c] sm:$0xf]
      %v1289 = vld [vmem:[#allocation10 + $0x20] sm:$0xf]
      %v1290 = vld [vmem:[#allocation10 + $0x24] sm:$0xf]
      %v1291 = vld [vmem:[#allocation10 + $0x28] sm:$0xf]
      %v1292 = vld [vmem:[#allocation10 + $0x2c] sm:$0xf]
      %v1293 = vld [vmem:[#allocation10 + $0x30] sm:$0xf]
      %v1294 = vld [vmem:[#allocation10 + $0x34] sm:$0xf]
      %v1295 = vld [vmem:[#allocation10 + $0x38] sm:$0xf]
      %v1296 = vld [vmem:[#allocation10 + $0x3c] sm:$0xf]
      %v1297 = vld [vmem:[%s4] sm:$0x1]
      %v1299 = vlaneseq
      %v1300 = vshrl.u32 %v1299, 7
      %v1301 = vsub.s32 0, %v1300
      %v1302 = vrot.slane %v1297, %v1301
      %v1320 = vunpack.c.l.b16 %v1281
      %v1321 = vunpack.c.l.b16 %v1282
      %v1322 = vunpack.c.l.b16 %v1283
      %v1323 = vunpack.c.l.b16 %v1284
      %v1324 = vunpack.c.l.b16 %v1285
      %v1325 = vunpack.c.l.b16 %v1286
      %v1326 = vunpack.c.l.b16 %v1287
      %v1327 = vunpack.c.l.b16 %v1288
      %v1328 = vunpack.c.l.b16 %v1289
      %v1329 = vunpack.c.l.b16 %v1290
      %v1330 = vunpack.c.l.b16 %v1291
      %v1331 = vunpack.c.l.b16 %v1292
      %v1332 = vunpack.c.l.b16 %v1293
      %v1333 = vunpack.c.l.b16 %v1294
      %v1334 = vunpack.c.l.b16 %v1295
      %v1335 = vunpack.c.l.b16 %v1296
      %v1336 = vpack.c.b16 %v1321, %v1320
      %v1337 = vpack.c.b16 %v1323, %v1322
      %v1338 = vpack.c.b16 %v1325, %v1324
      %v1339 = vpack.c.b16 %v1327, %v1326
      %v1340 = vpack.c.b16 %v1329, %v1328
      %v1341 = vpack.c.b16 %v1331, %v1330
      %v1342 = vpack.c.b16 %v1333, %v1332
      %v1343 = vpack.c.b16 %v1335, %v1334
      %1352 = vmatprep.subr.bf16.mxu0 0
      %1353 = vmatpush1.bf16.msra.mxu0 %v1343
      %1354 = vmatprep.subr.bf16.mxu0 0
      %1355 = vmatpush1.bf16.msra.mxu0 %v1342
      %1356 = vmatprep.subr.bf16.mxu0 0
      %1357 = vmatpush1.bf16.msra.mxu0 %v1341
      %1358 = vmatprep.subr.bf16.mxu0 0
      %1359 = vmatpush1.bf16.msra.mxu0 %v1340
      %1360 = vmatprep.subr.bf16.mxu0 0
      %1361 = vmatpush1.bf16.msra.mxu0 %v1339
      %1362 = vmatprep.subr.bf16.mxu0 0
      %1363 = vmatpush1.bf16.msra.mxu0 %v1338
      %1364 = vmatprep.subr.bf16.mxu0 0
      %1365 = vmatpush1.bf16.msra.mxu0 %v1337
      %1366 = vmatprep.subr.bf16.mxu0 0
      %1367 = vmatpush1.bf16.msra.mxu0 %v1336
      %1368 = vmatprep.subr.bf16.mxu0 0
      %1369 = vmatpush2.bf16.msra.mxu0 0
      %1370 = vmatprep.subr.bf16.mxu0 0
      %1371 = vmatpush2.bf16.msra.mxu0 0
      %1372 = vmatprep.subr.bf16.mxu0 0
      %1373 = vmatpush2.bf16.msra.mxu0 0
      %1374 = vmatprep.subr.bf16.mxu0 0
      %1375 = vmatpush2.bf16.msra.mxu0 0
      %1376 = vmatprep.subr.bf16.mxu0 0
      %1377 = vmatpush2.bf16.msra.mxu0 0
      %1378 = vmatprep.subr.bf16.mxu0 0
      %1379 = vmatpush2.bf16.msra.mxu0 0
      %1380 = vmatprep.subr.bf16.mxu0 0
      %1381 = vmatpush2.bf16.msra.mxu0 0
      %1382 = vmatprep.subr.bf16.mxu0 0
      %1383 = vmatpush2.bf16.msra.mxu0 0
      %1384 = vmatprep.mubr.bf16.mxu0 0
      %1385 = vmatmul.mubr.bf16.gmra.mxu0 %v1280
      %v1386 = vpop.f32.mrf.mxu0
      %v1387 = vadd.f32 %v1302, %v1386
      %v1388 = vpop.f32.mrf.mxu0
      %v1389 = vpop.f32.mrf.mxu0
      %v1390 = vpop.f32.mrf.mxu0
      %1391 = vdwg.mxu0
      %v1392 = vmax.f32 %v1387, 0.0
      %v1393 = vpack.c.bf16 %v1392, %v1392
      %v1394 = vld [vmem:[#allocation12] sm:$0xf]
      %v1395 = vld [vmem:[#allocation12 + $0x4] sm:$0xf]
      %v1396 = vld [vmem:[#allocation12 + $0x8] sm:$0xf]
      %v1397 = vld [vmem:[#allocation12 + $0xc] sm:$0xf]
      %v1398 = vld [vmem:[#allocation12 + $0x10] sm:$0xf]
      %v1399 = vld [vmem:[#allocation12 + $0x14] sm:$0xf]
      %v1400 = vld [vmem:[#allocation12 + $0x18] sm:$0xf]
      %v1401 = vld [vmem:[#allocation12 + $0x1c] sm:$0xf]
      %v1402 = vld [vmem:[#allocation12 + $0x20] sm:$0xf]
      %v1403 = vld [vmem:[#allocation12 + $0x24] sm:$0xf]
      %v1404 = vld [vmem:[#allocation12 + $0x28] sm:$0xf]
      %v1405 = vld [vmem:[#allocation12 + $0x2c] sm:$0xf]
      %v1406 = vld [vmem:[#allocation12 + $0x30] sm:$0xf]
      %v1407 = vld [vmem:[#allocation12 + $0x34] sm:$0xf]
      %v1408 = vld [vmem:[#allocation12 + $0x38] sm:$0xf]
      %v1409 = vld [vmem:[#allocation12 + $0x3c] sm:$0xf]
      %v1410 = vld [vmem:[%s6] sm:$0x1]
      %v1412 = vlaneseq
      %v1413 = vshrl.u32 %v1412, 7
      %v1414 = vsub.s32 0, %v1413
      %v1415 = vrot.slane %v1410, %v1414
      %v1433 = vunpack.c.l.b16 %v1394
      %v1434 = vunpack.c.l.b16 %v1395
      %v1435 = vunpack.c.l.b16 %v1396
      %v1436 = vunpack.c.l.b16 %v1397
      %v1437 = vunpack.c.l.b16 %v1398
      %v1438 = vunpack.c.l.b16 %v1399
      %v1439 = vunpack.c.l.b16 %v1400
      %v1440 = vunpack.c.l.b16 %v1401
      %v1441 = vunpack.c.l.b16 %v1402
      %v1442 = vunpack.c.l.b16 %v1403
      %v1443 = vunpack.c.l.b16 %v1404
      %v1444 = vunpack.c.l.b16 %v1405
      %v1445 = vunpack.c.l.b16 %v1406
      %v1446 = vunpack.c.l.b16 %v1407
      %v1447 = vunpack.c.l.b16 %v1408
      %v1448 = vunpack.c.l.b16 %v1409
      %v1449 = vpack.c.b16 %v1434, %v1433
      %v1450 = vpack.c.b16 %v1436, %v1435
      %v1451 = vpack.c.b16 %v1438, %v1437
      %v1452 = vpack.c.b16 %v1440, %v1439
      %v1453 = vpack.c.b16 %v1442, %v1441
      %v1454 = vpack.c.b16 %v1444, %v1443
      %v1455 = vpack.c.b16 %v1446, %v1445
      %v1456 = vpack.c.b16 %v1448, %v1447
      %1465 = vmatprep.subr.bf16.mxu0 0
      %1466 = vmatpush1.bf16.msra.mxu0 %v1456
      %1467 = vmatprep.subr.bf16.mxu0 0
      %1468 = vmatpush1.bf16.msra.mxu0 %v1455
      %1469 = vmatprep.subr.bf16.mxu0 0
      %1470 = vmatpush1.bf16.msra.mxu0 %v1454
      %1471 = vmatprep.subr.bf16.mxu0 0
      %1472 = vmatpush1.bf16.msra.mxu0 %v1453
      %1473 = vmatprep.subr.bf16.mxu0 0
      %1474 = vmatpush1.bf16.msra.mxu0 %v1452
      %1475 = vmatprep.subr.bf16.mxu0 0
      %1476 = vmatpush1.bf16.msra.mxu0 %v1451
      %1477 = vmatprep.subr.bf16.mxu0 0
      %1478 = vmatpush1.bf16.msra.mxu0 %v1450
      %1479 = vmatprep.subr.bf16.mxu0 0
      %1480 = vmatpush1.bf16.msra.mxu0 %v1449
      %1481 = vmatprep.subr.bf16.mxu0 0
      %1482 = vmatpush2.bf16.msra.mxu0 0
      %1483 = vmatprep.subr.bf16.mxu0 0
      %1484 = vmatpush2.bf16.msra.mxu0 0
      %1485 = vmatprep.subr.bf16.mxu0 0
      %1486 = vmatpush2.bf16.msra.mxu0 0
      %1487 = vmatprep.subr.bf16.mxu0 0
      %1488 = vmatpush2.bf16.msra.mxu0 0
      %1489 = vmatprep.subr.bf16.mxu0 0
      %1490 = vmatpush2.bf16.msra.mxu0 0
      %1491 = vmatprep.subr.bf16.mxu0 0
      %1492 = vmatpush2.bf16.msra.mxu0 0
      %1493 = vmatprep.subr.bf16.mxu0 0
      %1494 = vmatpush2.bf16.msra.mxu0 0
      %1495 = vmatprep.subr.bf16.mxu0 0
      %1496 = vmatpush2.bf16.msra.mxu0 0
      %1497 = vmatprep.mubr.bf16.mxu0 0
      %1498 = vmatmul.mubr.bf16.gmra.mxu0 %v1393
      %v1499 = vpop.f32.mrf.mxu0
      %v1500 = vadd.f32 %v1415, %v1499
      %v1501 = vpop.f32.mrf.mxu0
      %v1502 = vpop.f32.mrf.mxu0
      %v1503 = vpop.f32.mrf.mxu0
      %1504 = vdwg.mxu0
      %1505 = vst [vmem:[#allocation13] sm:$0xff] %v1500
    $region57: #{tpu_custom_call.1} parent=1 // pred_fallthru
      _
    // Predicated region
    $region58: #{tpu_custom_call.1} parent=1 // pred_check
      _
    $region59: #{tpu_custom_call.1} parent=1 // pred_check_branch
      %1507 = sbr.rel (0) target = $region61
    $region60: #{tpu_custom_call.1} parent=1 // pred_region
      %s1509 = ssub.s32 128, 128
      %1510 = vsyncadd [#allocation6], %s1509
      %s1512 = sshll.u32 [#allocation13], 4
      %s1513 = int_to_ptr.vmem [resolvable:$true] %s1512
      %1515 = dma.vmem_to_hbm [thread:$0]  %s1513, 128, %s7, [#allocation6]
    $region61: #{tpu_custom_call.1} parent=1 // pred_fallthru
      _
    // Predicated region
    $region62: #{tpu_custom_call.1} parent=1 // pred_check
      _
    $region63: #{tpu_custom_call.1} parent=1 // pred_check_branch
      %1517 = sbr.rel (0) target = $region65
    $region64: #{tpu_custom_call.1} parent=1 // pred_region
      %1518 = dma.done [#allocation6], 128
    $region65: #{tpu_custom_call.1} parent=1 // pred_fallthru
      _
    %1519 = vsyncpa [#allocation5], 1
    %1520 = vsyncpa [#allocation8], 1
    %1521 = vsyncpa [#allocation11], 1
    %1522 = vsyncpa [#allocation6], 1

</llo_original>
